<compile_context>
chip_gen: v7x
topology: tpu7x:2x2x1
jax: 0.10.0
libtpu: 0.0.40
codegen_flags: <defaults>
</compile_context>

<pallas_src>
import math

import jax
import jax.numpy as jnp
from jax.experimental import pallas as pl
from jax.experimental.pallas import tpu as pltpu


def _layernorm(x, gamma, beta, eps=1e-6):
    mean = jnp.mean(x, axis=-1, keepdims=True)
    var = jnp.mean((x - mean) ** 2, axis=-1, keepdims=True)
    return gamma * (x - mean) * jax.lax.rsqrt(var + eps) + beta


def _encoder_kernel(xs_ref, xq_ref, bias_ref,
                    wq_ref, bq_ref, wk_ref, bk_ref, wv_ref, bv_ref,
                    wo_ref, bo_ref,
                    w1_ref, b1_ref, w2_ref, b2_ref,
                    ln1_g_ref, ln1_b_ref, ln2_g_ref, ln2_b_ref,
                    out_ref):
    xs = xs_ref[0]            # (S,  D)  full sequence (source of K/V)
    xq = xq_ref[0]            # (TQ, D)  query tile
    mask_bias = bias_ref[0]   # (1,  S)  additive key mask: 0 attend / -1e9 masked

    S, D = xs.shape
    TQ = xq.shape[0]
    H = wq_ref.shape[0]

    ln1_g = ln1_g_ref[...]
    ln1_b = ln1_b_ref[...]

    # ---- sublayer 0: x + MHA(LayerNorm(x)) ----
    hs = _layernorm(xs, ln1_g, ln1_b)          # f32 elementwise (v5e-friendly)
    hq = _layernorm(xq, ln1_g, ln1_b)

    # head-batched operands: leading batch dim `h` on both sides of every dot.
    hs_b = jnp.broadcast_to(hs.astype(jnp.bfloat16)[None], (H, S, D))
    hq_b = jnp.broadcast_to(hq.astype(jnp.bfloat16)[None], (H, TQ, D))

    # projections: bf16 operands, f32 accumulation. 1/sqrt(dk) already folded
    # into wq/bq on the host.
    qh = jnp.einsum('hqd,hdk->hqk', hq_b, wq_ref[...],
                    preferred_element_type=jnp.float32) + bq_ref[...]      # (H,TQ,dk)
    kh = jnp.einsum('hsd,hdk->hsk', hs_b, wk_ref[...],
                    preferred_element_type=jnp.float32) + bk_ref[...]      # (H,S,dk)
    vh = jnp.einsum('hsd,hdk->hsk', hs_b, wv_ref[...],
                    preferred_element_type=jnp.float32) + bv_ref[...]      # (H,S,dk)

    scores = jnp.einsum('hqk,hsk->hqs', qh.astype(jnp.bfloat16),
                        kh.astype(jnp.bfloat16),
                        preferred_element_type=jnp.float32)                # (H,TQ,S)
    scores = scores + mask_bias[None]      # rank-1 key mask, hoisted out of heads

    # explicit softmax in f32; divide -> EUP reciprocal
    m = jnp.max(scores, axis=-1, keepdims=True)
    e = jnp.exp(scores - m)
    l = jnp.sum(e, axis=-1, keepdims=True)
    p = e * pl.reciprocal(l, approx=True)
    # TODO(synk): attention-prob dropout skipped (eval mode -> identity).

    ctx = jnp.einsum('hqs,hsk->hqk', p.astype(jnp.bfloat16),
                     vh.astype(jnp.bfloat16),
                     preferred_element_type=jnp.float32)                   # (H,TQ,dk)
    attn_h = jnp.einsum('hqk,hkd->hqd', ctx.astype(jnp.bfloat16), wo_ref[...],
                        preferred_element_type=jnp.float32)                # (H,TQ,D)
    # sum over heads of ctx_h @ Wo_h == concat(ctx_h) @ Wo  (no lane-axis concat)
    attn_out = jnp.sum(attn_h, axis=0) + bo_ref[...]
    x1 = xq + attn_out                                                     # residual

    # ---- sublayer 1: x1 + FFN(LayerNorm(x1)) ----
    h2 = _layernorm(x1, ln2_g_ref[...], ln2_b_ref[...])
    ff = jnp.dot(h2.astype(jnp.bfloat16), w1_ref[...],
                 preferred_element_type=jnp.float32) + b1_ref[...]
    ff = jax.nn.gelu(ff, approximate=True)
    ffo = jnp.dot(ff.astype(jnp.bfloat16), w2_ref[...],
                  preferred_element_type=jnp.float32) + b2_ref[...]

    # TODO(synk): sublayer / final dropout skipped (eval mode -> identity).
    out_ref[0] = (x1 + ffo).astype(out_ref.dtype)


def _pick_tq(S, cap=512):
    """Largest query-tile size <= cap that divides S (multiple of 8 when possible)."""
    if S <= cap:
        return S
    t = cap - (cap % 8)
    while t >= 8:
        if S % t == 0:
            return t
        t -= 8
    return S


def transformer_encoder(x, key_valid, params, n_heads, tq=None):
    """x: (B,S,D) f32. key_valid: (B,S) with 1 = attend, 0 = masked key (rank-1
    padding mask; replaces the materialized (B,1,S,S) mask)."""
    B, S, D = x.shape
    assert D % n_heads == 0, "attn_heads must divide d_model"
    dk = D // n_heads
    if tq is None:
        tq = _pick_tq(S)
    assert S % tq == 0

    bf16 = jnp.bfloat16
    scale = 1.0 / math.sqrt(dk)

    def split_heads_in(w, b):     # w:(D,D)->(H,D,dk), b:(1,D)->(H,1,dk)
        wh = w.reshape(D, n_heads, dk).transpose(1, 0, 2)
        bh = b.reshape(1, n_heads, dk).transpose(1, 0, 2)
        return wh, bh

    # fold 1/sqrt(dk) into the query projection; pre-split heads on the host.
    wq_h, bq_h = split_heads_in(params["wq"] * scale, params["bq"] * scale)
    wk_h, bk_h = split_heads_in(params["wk"], params["bk"])
    wv_h, bv_h = split_heads_in(params["wv"], params["bv"])
    wo_h = params["wo"].reshape(n_heads, dk, D)

    plist = [wq_h.astype(bf16), bq_h.astype(jnp.float32),
             wk_h.astype(bf16), bk_h.astype(jnp.float32),
             wv_h.astype(bf16), bv_h.astype(jnp.float32),
             wo_h.astype(bf16), params["bo"],
             params["w1"].astype(bf16), params["b1"],
             params["w2"].astype(bf16), params["b2"],
             params["ln1_g"], params["ln1_b"], params["ln2_g"], params["ln2_b"]]

    # rank-1 additive key-mask bias, shipped as (B,1,S) f32 (no S x S blowup).
    mask_bias = jnp.where(key_valid == 0, -1e9, 0.0).astype(jnp.float32)[:, None, :]

    def full_spec(p):
        nd = p.ndim
        return pl.BlockSpec(p.shape, lambda b, q, _nd=nd: (0,) * _nd)

    return pl.pallas_call(
        _encoder_kernel,
        out_shape=jax.ShapeDtypeStruct((B, S, D), x.dtype),
        grid_spec=pltpu.PrefetchScalarGridSpec(
            num_scalar_prefetch=0,
            grid=(B, S // tq),
            in_specs=[pl.BlockSpec((1, S, D), lambda b, q: (b, 0, 0)),   # full seq (K/V)
                      pl.BlockSpec((1, tq, D), lambda b, q: (b, q, 0)),  # query tile
                      pl.BlockSpec((1, 1, S), lambda b, q: (b, 0, 0))]   # key-mask bias
                     + [full_spec(p) for p in plist],
            out_specs=pl.BlockSpec((1, tq, D), lambda b, q: (b, q, 0)),
        ),
        compiler_params=pltpu.CompilerParams(
            dimension_semantics=("parallel", "parallel"),
            vmem_limit_bytes=48 * 1024 * 1024),
    )(x, x, mask_bias, *plist)


def reference_encoder(x, mask, params, n_heads):
    """Pure-JAX f32 reference for sanity checking (uses the original, unfused params)."""
    B, S, D = x.shape
    dk = D // n_heads
    p = params

    h = _layernorm(x, p["ln1_g"], p["ln1_b"])
    q = h @ p["wq"] + p["bq"]
    k = h @ p["wk"] + p["bk"]
    v = h @ p["wv"] + p["bv"]
    q = q.reshape(B, S, n_heads, dk).transpose(0, 2, 1, 3)
    k = k.reshape(B, S, n_heads, dk).transpose(0, 2, 1, 3)
    v = v.reshape(B, S, n_heads, dk).transpose(0, 2, 1, 3)
    scores = jnp.einsum("bhqd,bhkd->bhqk", q, k) / math.sqrt(dk)
    scores = jnp.where(mask == 0, -1e9, scores)
    attn = jax.nn.softmax(scores, axis=-1)
    ctx = jnp.einsum("bhqk,bhkd->bhqd", attn, v)
    ctx = ctx.transpose(0, 2, 1, 3).reshape(B, S, D)
    x1 = x + (ctx @ p["wo"] + p["bo"])
    h2 = _layernorm(x1, p["ln2_g"], p["ln2_b"])
    ff = jax.nn.gelu(h2 @ p["w1"] + p["b1"], approximate=True) @ p["w2"] + p["b2"]
    return x1 + ff


def make_params(key, d_model, d_ff):
    keys = jax.random.split(key, 6)
    s = 0.02
    return {
        "wq": s * jax.random.normal(keys[0], (d_model, d_model), jnp.float32),
        "bq": jnp.zeros((1, d_model), jnp.float32),
        "wk": s * jax.random.normal(keys[1], (d_model, d_model), jnp.float32),
        "bk": jnp.zeros((1, d_model), jnp.float32),
        "wv": s * jax.random.normal(keys[2], (d_model, d_model), jnp.float32),
        "bv": jnp.zeros((1, d_model), jnp.float32),
        "wo": s * jax.random.normal(keys[3], (d_model, d_model), jnp.float32),
        "bo": jnp.zeros((1, d_model), jnp.float32),
        "w1": s * jax.random.normal(keys[4], (d_model, d_ff), jnp.float32),
        "b1": jnp.zeros((1, d_ff), jnp.float32),
        "w2": s * jax.random.normal(keys[5], (d_ff, d_model), jnp.float32),
        "b2": jnp.zeros((1, d_model), jnp.float32),
        "ln1_g": jnp.ones((1, d_model), jnp.float32),
        "ln1_b": jnp.zeros((1, d_model), jnp.float32),
        "ln2_g": jnp.ones((1, d_model), jnp.float32),
        "ln2_b": jnp.zeros((1, d_model), jnp.float32),
    }


if __name__ == "__main__":
    B, S, D, DFF, H = 2, 8, 32, 128, 4
    key = jax.random.PRNGKey(0)
    kx, kp = jax.random.split(key, 2)

    x = jax.random.normal(kx, (B, S, D), jnp.float32)
    params = make_params(kp, D, DFF)

    # padding mask: batch 1 has its last 2 tokens masked out
    key_valid = jnp.ones((B, S), jnp.int32).at[1, -2:].set(0)          # (B, S)

    out = transformer_encoder(x, key_valid, params, H)
    out = jax.block_until_ready(out)

    # reference uses the original (B,1,S,S) mask layout of the PyTorch module
    mask4d = jnp.broadcast_to(key_valid[:, None, None, :], (B, 1, S, S)).astype(jnp.int32)
    ref = reference_encoder(x, mask4d, params, H)

    assert out.shape == (B, S, D)
    assert bool(jnp.all(jnp.isfinite(out)))
    assert bool(jnp.allclose(out, ref, atol=5e-2, rtol=5e-2)), "mismatch vs JAX reference"

    print("KERNEL_OK")
</pallas_src>

<mosaic_0001>
module attributes {stable_mosaic.version = 11 : i64} {
  func.func @_encoder_kernel(%arg0: i32, %arg1: i32, %arg2: memref<1x8x32xf32, #tpu.memory_space<vmem>>, %arg3: memref<1x8x32xf32, #tpu.memory_space<vmem>>, %arg4: memref<1x1x8xf32, #tpu.memory_space<vmem>>, %arg5: memref<4x32x8xbf16, #tpu.memory_space<vmem>>, %arg6: memref<4x1x8xf32, #tpu.memory_space<vmem>>, %arg7: memref<4x32x8xbf16, #tpu.memory_space<vmem>>, %arg8: memref<4x1x8xf32, #tpu.memory_space<vmem>>, %arg9: memref<4x32x8xbf16, #tpu.memory_space<vmem>>, %arg10: memref<4x1x8xf32, #tpu.memory_space<vmem>>, %arg11: memref<4x8x32xbf16, #tpu.memory_space<vmem>>, %arg12: memref<1x32xf32, #tpu.memory_space<vmem>>, %arg13: memref<32x128xbf16, #tpu.memory_space<vmem>>, %arg14: memref<1x128xf32, #tpu.memory_space<vmem>>, %arg15: memref<128x32xbf16, #tpu.memory_space<vmem>>, %arg16: memref<1x32xf32, #tpu.memory_space<vmem>>, %arg17: memref<1x32xf32, #tpu.memory_space<vmem>>, %arg18: memref<1x32xf32, #tpu.memory_space<vmem>>, %arg19: memref<1x32xf32, #tpu.memory_space<vmem>>, %arg20: memref<1x32xf32, #tpu.memory_space<vmem>>, %arg21: memref<1x8x32xf32, #tpu.memory_space<vmem>>) attributes {dimension_semantics = [#tpu.dimension_semantics<parallel>, #tpu.dimension_semantics<parallel>], iteration_bounds = array<i64: 2, 1>, scalar_prefetch = 0 : i64, scratch_operands = 0 : i64, tpu.core_type = #tpu.core_type<tc>, window_params = [{transform_indices = @transform_0, window_bounds = array<i64: 1, 8, 32>}, {transform_indices = @transform_1, window_bounds = array<i64: 1, 8, 32>}, {transform_indices = @transform_2, window_bounds = array<i64: 1, 1, 8>}, {pipeline_mode = #tpu.pipeline_mode<synchronous>, transform_indices = @transform_3, window_bounds = array<i64: 4, 32, 8>}, {pipeline_mode = #tpu.pipeline_mode<synchronous>, transform_indices = @transform_4, window_bounds = array<i64: 4, 1, 8>}, {pipeline_mode = #tpu.pipeline_mode<synchronous>, transform_indices = @transform_5, window_bounds = array<i64: 4, 32, 8>}, {pipeline_mode = #tpu.pipeline_mode<synchronous>, transform_indices = @transform_6, window_bounds = array<i64: 4, 1, 8>}, {pipeline_mode = #tpu.pipeline_mode<synchronous>, transform_indices = @transform_7, window_bounds = array<i64: 4, 32, 8>}, {pipeline_mode = #tpu.pipeline_mode<synchronous>, transform_indices = @transform_8, window_bounds = array<i64: 4, 1, 8>}, {pipeline_mode = #tpu.pipeline_mode<synchronous>, transform_indices = @transform_9, window_bounds = array<i64: 4, 8, 32>}, {pipeline_mode = #tpu.pipeline_mode<synchronous>, transform_indices = @transform_10, window_bounds = array<i64: 1, 32>}, {pipeline_mode = #tpu.pipeline_mode<synchronous>, transform_indices = @transform_11, window_bounds = array<i64: 32, 128>}, {pipeline_mode = #tpu.pipeline_mode<synchronous>, transform_indices = @transform_12, window_bounds = array<i64: 1, 128>}, {pipeline_mode = #tpu.pipeline_mode<synchronous>, transform_indices = @transform_13, window_bounds = array<i64: 128, 32>}, {pipeline_mode = #tpu.pipeline_mode<synchronous>, transform_indices = @transform_14, window_bounds = array<i64: 1, 32>}, {pipeline_mode = #tpu.pipeline_mode<synchronous>, transform_indices = @transform_15, window_bounds = array<i64: 1, 32>}, {pipeline_mode = #tpu.pipeline_mode<synchronous>, transform_indices = @transform_16, window_bounds = array<i64: 1, 32>}, {pipeline_mode = #tpu.pipeline_mode<synchronous>, transform_indices = @transform_17, window_bounds = array<i64: 1, 32>}, {pipeline_mode = #tpu.pipeline_mode<synchronous>, transform_indices = @transform_18, window_bounds = array<i64: 1, 32>}, {transform_indices = @transform_19, window_bounds = array<i64: 1, 8, 32>}]} {
    %c0 = arith.constant 0 : index
    %c0_0 = arith.constant 0 : index
    %c0_1 = arith.constant 0 : index
    %0 = vector.load %arg2[%c0, %c0_0, %c0_1] : memref<1x8x32xf32, #tpu.memory_space<vmem>>, vector<1x8x32xf32>
    %1 = vector.shape_cast %0 : vector<1x8x32xf32> to vector<8x32xf32>
    %c0_2 = arith.constant 0 : index
    %c0_3 = arith.constant 0 : index
    %c0_4 = arith.constant 0 : index
    %2 = vector.load %arg3[%c0_2, %c0_3, %c0_4] : memref<1x8x32xf32, #tpu.memory_space<vmem>>, vector<1x8x32xf32>
    %3 = vector.shape_cast %2 : vector<1x8x32xf32> to vector<8x32xf32>
    %c0_5 = arith.constant 0 : index
    %c0_6 = arith.constant 0 : index
    %c0_7 = arith.constant 0 : index
    %4 = vector.load %arg4[%c0_5, %c0_6, %c0_7] : memref<1x1x8xf32, #tpu.memory_space<vmem>>, vector<1x1x8xf32>
    %5 = vector.shape_cast %4 : vector<1x1x8xf32> to vector<1x8xf32>
    %c0_8 = arith.constant 0 : index
    %c0_9 = arith.constant 0 : index
    %6 = vector.load %arg17[%c0_8, %c0_9] : memref<1x32xf32, #tpu.memory_space<vmem>>, vector<1x32xf32>
    %c0_10 = arith.constant 0 : index
    %c0_11 = arith.constant 0 : index
    %7 = vector.load %arg18[%c0_10, %c0_11] : memref<1x32xf32, #tpu.memory_space<vmem>>, vector<1x32xf32>
    %cst = arith.constant dense<0.000000e+00> : vector<8xf32>
    %8 = vector.multi_reduction <add>, %1, %cst [1] : vector<8x32xf32> to vector<8xf32>
    %9 = vector.shape_cast %8 : vector<8xf32> to vector<8x1xf32>
    %cst_12 = arith.constant 3.200000e+01 : f32
    %10 = vector.broadcast %cst_12 : f32 to vector<8x1xf32>
    %11 = arith.divf %9, %10 : vector<8x1xf32>
    %12 = vector.broadcast %11 : vector<8x1xf32> to vector<8x32xf32>
    %13 = arith.subf %1, %12 : vector<8x32xf32>
    %14 = arith.mulf %13, %13 : vector<8x32xf32>
    %cst_13 = arith.constant dense<0.000000e+00> : vector<8xf32>
    %15 = vector.multi_reduction <add>, %14, %cst_13 [1] : vector<8x32xf32> to vector<8xf32>
    %16 = vector.shape_cast %15 : vector<8xf32> to vector<8x1xf32>
    %cst_14 = arith.constant 3.200000e+01 : f32
    %17 = vector.broadcast %cst_14 : f32 to vector<8x1xf32>
    %18 = arith.divf %16, %17 : vector<8x1xf32>
    %19 = vector.broadcast %11 : vector<8x1xf32> to vector<8x32xf32>
    %20 = arith.subf %1, %19 : vector<8x32xf32>
    %21 = vector.broadcast %6 : vector<1x32xf32> to vector<8x32xf32>
    %22 = arith.mulf %21, %20 : vector<8x32xf32>
    %cst_15 = arith.constant 9.99999997E-7 : f32
    %23 = vector.broadcast %cst_15 : f32 to vector<8x1xf32>
    %24 = arith.addf %18, %23 : vector<8x1xf32>
    %25 = math.rsqrt %24 : vector<8x1xf32>
    %26 = vector.broadcast %25 : vector<8x1xf32> to vector<8x32xf32>
    %27 = arith.mulf %22, %26 : vector<8x32xf32>
    %28 = vector.broadcast %7 : vector<1x32xf32> to vector<8x32xf32>
    %29 = arith.addf %27, %28 : vector<8x32xf32>
    %cst_16 = arith.constant dense<0.000000e+00> : vector<8xf32>
    %30 = vector.multi_reduction <add>, %3, %cst_16 [1] : vector<8x32xf32> to vector<8xf32>
    %31 = vector.shape_cast %30 : vector<8xf32> to vector<8x1xf32>
    %cst_17 = arith.constant 3.200000e+01 : f32
    %32 = vector.broadcast %cst_17 : f32 to vector<8x1xf32>
    %33 = arith.divf %31, %32 : vector<8x1xf32>
    %34 = vector.broadcast %33 : vector<8x1xf32> to vector<8x32xf32>
    %35 = arith.subf %3, %34 : vector<8x32xf32>
    %36 = arith.mulf %35, %35 : vector<8x32xf32>
    %cst_18 = arith.constant dense<0.000000e+00> : vector<8xf32>
    %37 = vector.multi_reduction <add>, %36, %cst_18 [1] : vector<8x32xf32> to vector<8xf32>
    %38 = vector.shape_cast %37 : vector<8xf32> to vector<8x1xf32>
    %cst_19 = arith.constant 3.200000e+01 : f32
    %39 = vector.broadcast %cst_19 : f32 to vector<8x1xf32>
    %40 = arith.divf %38, %39 : vector<8x1xf32>
    %41 = vector.broadcast %33 : vector<8x1xf32> to vector<8x32xf32>
    %42 = arith.subf %3, %41 : vector<8x32xf32>
    %43 = vector.broadcast %6 : vector<1x32xf32> to vector<8x32xf32>
    %44 = arith.mulf %43, %42 : vector<8x32xf32>
    %cst_20 = arith.constant 9.99999997E-7 : f32
    %45 = vector.broadcast %cst_20 : f32 to vector<8x1xf32>
    %46 = arith.addf %40, %45 : vector<8x1xf32>
    %47 = math.rsqrt %46 : vector<8x1xf32>
    %48 = vector.broadcast %47 : vector<8x1xf32> to vector<8x32xf32>
    %49 = arith.mulf %44, %48 : vector<8x32xf32>
    %50 = vector.broadcast %7 : vector<1x32xf32> to vector<8x32xf32>
    %51 = arith.addf %49, %50 : vector<8x32xf32>
    %52 = arith.truncf %29 : vector<8x32xf32> to vector<8x32xbf16>
    %53 = vector.shape_cast %52 : vector<8x32xbf16> to vector<1x8x32xbf16>
    %54 = vector.shape_cast %53 : vector<1x8x32xbf16> to vector<1x8x32xbf16>
    %55 = vector.broadcast %54 : vector<1x8x32xbf16> to vector<4x8x32xbf16>
    %56 = arith.truncf %51 : vector<8x32xf32> to vector<8x32xbf16>
    %57 = vector.shape_cast %56 : vector<8x32xbf16> to vector<1x8x32xbf16>
    %58 = vector.shape_cast %57 : vector<1x8x32xbf16> to vector<1x8x32xbf16>
    %59 = vector.broadcast %58 : vector<1x8x32xbf16> to vector<4x8x32xbf16>
    %c0_21 = arith.constant 0 : index
    %c0_22 = arith.constant 0 : index
    %c0_23 = arith.constant 0 : index
    %60 = vector.load %arg5[%c0_21, %c0_22, %c0_23] : memref<4x32x8xbf16, #tpu.memory_space<vmem>>, vector<4x32x8xbf16>
    "tpu.trace_start"() <{level = 10 : i32, message = "hqd,hdk->hqk"}> : () -> ()
    %cst_24 = arith.constant dense<0.000000e+00> : vector<4x8x8xf32>
    %61 = tpu.matmul %59, %60, %cst_24 {dimension_numbers = #tpu.dot_dimension_numbers<[2], [1], [1], [2], [0, 0, 0, 1, 1, 2], [0], [0]>} : vector<4x8x32xbf16>, vector<4x32x8xbf16>, vector<4x8x8xf32> -> vector<4x8x8xf32>
    "tpu.trace_stop"() : () -> ()
    %c0_25 = arith.constant 0 : index
    %c0_26 = arith.constant 0 : index
    %c0_27 = arith.constant 0 : index
    %62 = vector.load %arg6[%c0_25, %c0_26, %c0_27] : memref<4x1x8xf32, #tpu.memory_space<vmem>>, vector<4x1x8xf32>
    %63 = vector.broadcast %62 : vector<4x1x8xf32> to vector<4x8x8xf32>
    %64 = arith.addf %61, %63 : vector<4x8x8xf32>
    %c0_28 = arith.constant 0 : index
    %c0_29 = arith.constant 0 : index
    %c0_30 = arith.constant 0 : index
    %65 = vector.load %arg7[%c0_28, %c0_29, %c0_30] : memref<4x32x8xbf16, #tpu.memory_space<vmem>>, vector<4x32x8xbf16>
    "tpu.trace_start"() <{level = 10 : i32, message = "hsd,hdk->hsk"}> : () -> ()
    %cst_31 = arith.constant dense<0.000000e+00> : vector<4x8x8xf32>
    %66 = tpu.matmul %55, %65, %cst_31 {dimension_numbers = #tpu.dot_dimension_numbers<[2], [1], [1], [2], [0, 0, 0, 1, 1, 2], [0], [0]>} : vector<4x8x32xbf16>, vector<4x32x8xbf16>, vector<4x8x8xf32> -> vector<4x8x8xf32>
    "tpu.trace_stop"() : () -> ()
    %c0_32 = arith.constant 0 : index
    %c0_33 = arith.constant 0 : index
    %c0_34 = arith.constant 0 : index
    %67 = vector.load %arg8[%c0_32, %c0_33, %c0_34] : memref<4x1x8xf32, #tpu.memory_space<vmem>>, vector<4x1x8xf32>
    %68 = vector.broadcast %67 : vector<4x1x8xf32> to vector<4x8x8xf32>
    %69 = arith.addf %66, %68 : vector<4x8x8xf32>
    %c0_35 = arith.constant 0 : index
    %c0_36 = arith.constant 0 : index
    %c0_37 = arith.constant 0 : index
    %70 = vector.load %arg9[%c0_35, %c0_36, %c0_37] : memref<4x32x8xbf16, #tpu.memory_space<vmem>>, vector<4x32x8xbf16>
    "tpu.trace_start"() <{level = 10 : i32, message = "hsd,hdk->hsk"}> : () -> ()
    %cst_38 = arith.constant dense<0.000000e+00> : vector<4x8x8xf32>
    %71 = tpu.matmul %55, %70, %cst_38 {dimension_numbers = #tpu.dot_dimension_numbers<[2], [1], [1], [2], [0, 0, 0, 1, 1, 2], [0], [0]>} : vector<4x8x32xbf16>, vector<4x32x8xbf16>, vector<4x8x8xf32> -> vector<4x8x8xf32>
    "tpu.trace_stop"() : () -> ()
    %c0_39 = arith.constant 0 : index
    %c0_40 = arith.constant 0 : index
    %c0_41 = arith.constant 0 : index
    %72 = vector.load %arg10[%c0_39, %c0_40, %c0_41] : memref<4x1x8xf32, #tpu.memory_space<vmem>>, vector<4x1x8xf32>
    %73 = vector.broadcast %72 : vector<4x1x8xf32> to vector<4x8x8xf32>
    %74 = arith.addf %71, %73 : vector<4x8x8xf32>
    %75 = arith.truncf %64 : vector<4x8x8xf32> to vector<4x8x8xbf16>
    %76 = arith.truncf %69 : vector<4x8x8xf32> to vector<4x8x8xbf16>
    "tpu.trace_start"() <{level = 10 : i32, message = "hqk,hsk->hqs"}> : () -> ()
    %cst_42 = arith.constant dense<0.000000e+00> : vector<4x8x8xf32>
    %77 = tpu.matmul %75, %76, %cst_42 {dimension_numbers = #tpu.dot_dimension_numbers<[2], [2], [1], [1], [0, 0, 0, 1, 1, 1], [0], [0]>} : vector<4x8x8xbf16>, vector<4x8x8xbf16>, vector<4x8x8xf32> -> vector<4x8x8xf32>
    "tpu.trace_stop"() : () -> ()
    %78 = vector.shape_cast %5 : vector<1x8xf32> to vector<1x1x8xf32>
    %79 = vector.broadcast %78 : vector<1x1x8xf32> to vector<4x8x8xf32>
    %80 = arith.addf %77, %79 : vector<4x8x8xf32>
    %cst_43 = arith.constant dense<0xFF800000> : vector<4x8xf32>
    %81 = vector.multi_reduction <maximumf>, %80, %cst_43 [2] : vector<4x8x8xf32> to vector<4x8xf32>
    %82 = vector.shape_cast %81 : vector<4x8xf32> to vector<4x8x1xf32>
    %83 = vector.broadcast %82 : vector<4x8x1xf32> to vector<4x8x8xf32>
    %84 = arith.subf %80, %83 : vector<4x8x8xf32>
    %85 = math.exp %84 : vector<4x8x8xf32>
    %cst_44 = arith.constant dense<0.000000e+00> : vector<4x8xf32>
    %86 = vector.multi_reduction <add>, %85, %cst_44 [2] : vector<4x8x8xf32> to vector<4x8xf32>
    %87 = vector.shape_cast %86 : vector<4x8xf32> to vector<4x8x1xf32>
    %88 = tpu.reciprocal %87 {approx = true} : vector<4x8x1xf32> -> vector<4x8x1xf32>
    %89 = vector.broadcast %88 : vector<4x8x1xf32> to vector<4x8x8xf32>
    %90 = arith.mulf %85, %89 : vector<4x8x8xf32>
    %91 = arith.truncf %90 : vector<4x8x8xf32> to vector<4x8x8xbf16>
    %92 = arith.truncf %74 : vector<4x8x8xf32> to vector<4x8x8xbf16>
    "tpu.trace_start"() <{level = 10 : i32, message = "hqs,hsk->hqk"}> : () -> ()
    %cst_45 = arith.constant dense<0.000000e+00> : vector<4x8x8xf32>
    %93 = tpu.matmul %91, %92, %cst_45 {dimension_numbers = #tpu.dot_dimension_numbers<[2], [1], [1], [2], [0, 0, 0, 1, 1, 2], [0], [0]>} : vector<4x8x8xbf16>, vector<4x8x8xbf16>, vector<4x8x8xf32> -> vector<4x8x8xf32>
    "tpu.trace_stop"() : () -> ()
    %94 = arith.truncf %93 : vector<4x8x8xf32> to vector<4x8x8xbf16>
    %c0_46 = arith.constant 0 : index
    %c0_47 = arith.constant 0 : index
    %c0_48 = arith.constant 0 : index
    %95 = vector.load %arg11[%c0_46, %c0_47, %c0_48] : memref<4x8x32xbf16, #tpu.memory_space<vmem>>, vector<4x8x32xbf16>
    "tpu.trace_start"() <{level = 10 : i32, message = "hqk,hkd->hqd"}> : () -> ()
    %cst_49 = arith.constant dense<0.000000e+00> : vector<4x8x32xf32>
    %96 = tpu.matmul %94, %95, %cst_49 {dimension_numbers = #tpu.dot_dimension_numbers<[2], [1], [1], [2], [0, 0, 0, 1, 1, 2], [0], [0]>} : vector<4x8x8xbf16>, vector<4x8x32xbf16>, vector<4x8x32xf32> -> vector<4x8x32xf32>
    "tpu.trace_stop"() : () -> ()
    %cst_50 = arith.constant dense<0.000000e+00> : vector<8x32xf32>
    %97 = vector.multi_reduction <add>, %96, %cst_50 [0] : vector<4x8x32xf32> to vector<8x32xf32>
    %c0_51 = arith.constant 0 : index
    %c0_52 = arith.constant 0 : index
    %98 = vector.load %arg12[%c0_51, %c0_52] : memref<1x32xf32, #tpu.memory_space<vmem>>, vector<1x32xf32>
    %99 = vector.broadcast %98 : vector<1x32xf32> to vector<8x32xf32>
    %100 = arith.addf %97, %99 : vector<8x32xf32>
    %101 = arith.addf %3, %100 : vector<8x32xf32>
    %c0_53 = arith.constant 0 : index
    %c0_54 = arith.constant 0 : index
    %102 = vector.load %arg19[%c0_53, %c0_54] : memref<1x32xf32, #tpu.memory_space<vmem>>, vector<1x32xf32>
    %c0_55 = arith.constant 0 : index
    %c0_56 = arith.constant 0 : index
    %103 = vector.load %arg20[%c0_55, %c0_56] : memref<1x32xf32, #tpu.memory_space<vmem>>, vector<1x32xf32>
    %cst_57 = arith.constant dense<0.000000e+00> : vector<8xf32>
    %104 = vector.multi_reduction <add>, %101, %cst_57 [1] : vector<8x32xf32> to vector<8xf32>
    %105 = vector.shape_cast %104 : vector<8xf32> to vector<8x1xf32>
    %cst_58 = arith.constant 3.200000e+01 : f32
    %106 = vector.broadcast %cst_58 : f32 to vector<8x1xf32>
    %107 = arith.divf %105, %106 : vector<8x1xf32>
    %108 = vector.broadcast %107 : vector<8x1xf32> to vector<8x32xf32>
    %109 = arith.subf %101, %108 : vector<8x32xf32>
    %110 = arith.mulf %109, %109 : vector<8x32xf32>
    %cst_59 = arith.constant dense<0.000000e+00> : vector<8xf32>
    %111 = vector.multi_reduction <add>, %110, %cst_59 [1] : vector<8x32xf32> to vector<8xf32>
    %112 = vector.shape_cast %111 : vector<8xf32> to vector<8x1xf32>
    %cst_60 = arith.constant 3.200000e+01 : f32
    %113 = vector.broadcast %cst_60 : f32 to vector<8x1xf32>
    %114 = arith.divf %112, %113 : vector<8x1xf32>
    %115 = vector.broadcast %107 : vector<8x1xf32> to vector<8x32xf32>
    %116 = arith.subf %101, %115 : vector<8x32xf32>
    %117 = vector.broadcast %102 : vector<1x32xf32> to vector<8x32xf32>
    %118 = arith.mulf %117, %116 : vector<8x32xf32>
    %cst_61 = arith.constant 9.99999997E-7 : f32
    %119 = vector.broadcast %cst_61 : f32 to vector<8x1xf32>
    %120 = arith.addf %114, %119 : vector<8x1xf32>
    %121 = math.rsqrt %120 : vector<8x1xf32>
    %122 = vector.broadcast %121 : vector<8x1xf32> to vector<8x32xf32>
    %123 = arith.mulf %118, %122 : vector<8x32xf32>
    %124 = vector.broadcast %103 : vector<1x32xf32> to vector<8x32xf32>
    %125 = arith.addf %123, %124 : vector<8x32xf32>
    %126 = arith.truncf %125 : vector<8x32xf32> to vector<8x32xbf16>
    %c0_62 = arith.constant 0 : index
    %c0_63 = arith.constant 0 : index
    %127 = vector.load %arg13[%c0_62, %c0_63] : memref<32x128xbf16, #tpu.memory_space<vmem>>, vector<32x128xbf16>
    %cst_64 = arith.constant dense<0.000000e+00> : vector<8x128xf32>
    %128 = tpu.matmul %126, %127, %cst_64 {dimension_numbers = #tpu.dot_dimension_numbers<[1], [0], [0], [1], [0, 0, 1, 1], [], []>} : vector<8x32xbf16>, vector<32x128xbf16>, vector<8x128xf32> -> vector<8x128xf32>
    %c0_65 = arith.constant 0 : index
    %c0_66 = arith.constant 0 : index
    %129 = vector.load %arg14[%c0_65, %c0_66] : memref<1x128xf32, #tpu.memory_space<vmem>>, vector<1x128xf32>
    %130 = vector.broadcast %129 : vector<1x128xf32> to vector<8x128xf32>
    %131 = arith.addf %128, %130 : vector<8x128xf32>
    %132 = arith.mulf %131, %131 : vector<8x128xf32>
    %133 = arith.mulf %131, %132 : vector<8x128xf32>
    %cst_67 = arith.constant 4.471500e-02 : f32
    %134 = vector.broadcast %cst_67 : f32 to vector<8x128xf32>
    %135 = arith.mulf %134, %133 : vector<8x128xf32>
    %136 = arith.addf %131, %135 : vector<8x128xf32>
    %cst_68 = arith.constant 0.797884583 : f32
    %137 = vector.broadcast %cst_68 : f32 to vector<8x128xf32>
    %138 = arith.mulf %137, %136 : vector<8x128xf32>
    %139 = math.tanh %138 : vector<8x128xf32>
    %cst_69 = arith.constant 1.000000e+00 : f32
    %140 = vector.broadcast %cst_69 : f32 to vector<8x128xf32>
    %141 = arith.addf %140, %139 : vector<8x128xf32>
    %cst_70 = arith.constant 5.000000e-01 : f32
    %142 = vector.broadcast %cst_70 : f32 to vector<8x128xf32>
    %143 = arith.mulf %142, %141 : vector<8x128xf32>
    %144 = arith.mulf %131, %143 : vector<8x128xf32>
    %145 = arith.truncf %144 : vector<8x128xf32> to vector<8x128xbf16>
    %c0_71 = arith.constant 0 : index
    %c0_72 = arith.constant 0 : index
    %146 = vector.load %arg15[%c0_71, %c0_72] : memref<128x32xbf16, #tpu.memory_space<vmem>>, vector<128x32xbf16>
    %cst_73 = arith.constant dense<0.000000e+00> : vector<8x32xf32>
    %147 = tpu.matmul %145, %146, %cst_73 {dimension_numbers = #tpu.dot_dimension_numbers<[1], [0], [0], [1], [0, 0, 1, 1], [], []>} : vector<8x128xbf16>, vector<128x32xbf16>, vector<8x32xf32> -> vector<8x32xf32>
    %c0_74 = arith.constant 0 : index
    %c0_75 = arith.constant 0 : index
    %148 = vector.load %arg16[%c0_74, %c0_75] : memref<1x32xf32, #tpu.memory_space<vmem>>, vector<1x32xf32>
    %149 = vector.broadcast %148 : vector<1x32xf32> to vector<8x32xf32>
    %150 = arith.addf %147, %149 : vector<8x32xf32>
    %151 = arith.addf %101, %150 : vector<8x32xf32>
    %c0_76 = arith.constant 0 : index
    %c0_77 = arith.constant 0 : index
    %c0_78 = arith.constant 0 : index
    %152 = vector.load %arg21[%c0_76, %c0_77, %c0_78] : memref<1x8x32xf32, #tpu.memory_space<vmem>>, vector<1x8x32xf32>
    %153 = vector.shape_cast %152 : vector<1x8x32xf32> to vector<8x32xf32>
    %154 = vector.shape_cast %151 : vector<8x32xf32> to vector<1x8x32xf32>
    tpu.vector_store %arg21[%c0_76, %c0_77, %c0_78], %154 {strides = array<i32>} : memref<1x8x32xf32, #tpu.memory_space<vmem>>, vector<1x8x32xf32>,
    return
  }
  func.func @transform_0(%arg0: i32, %arg1: i32) -> (i32, i32, i32) {
    %c0_i32 = arith.constant 0 : i32
    %c0_i32_0 = arith.constant 0 : i32
    %c0_i32_1 = arith.constant 0 : i32
    return %arg0, %c0_i32, %c0_i32_0 : i32, i32, i32
  }
  func.func @transform_1(%arg0: i32, %arg1: i32) -> (i32, i32, i32) {
    %c0_i32 = arith.constant 0 : i32
    %c0_i32_0 = arith.constant 0 : i32
    return %arg0, %arg1, %c0_i32 : i32, i32, i32
  }
  func.func @transform_2(%arg0: i32, %arg1: i32) -> (i32, i32, i32) {
    %c0_i32 = arith.constant 0 : i32
    %c0_i32_0 = arith.constant 0 : i32
    %c0_i32_1 = arith.constant 0 : i32
    return %arg0, %c0_i32, %c0_i32_0 : i32, i32, i32
  }
  func.func @transform_3(%arg0: i32, %arg1: i32) -> (i32, i32, i32) {
    %c0_i32 = arith.constant 0 : i32
    %c0_i32_0 = arith.constant 0 : i32
    %c0_i32_1 = arith.constant 0 : i32
    %c0_i32_2 = arith.constant 0 : i32
    return %c0_i32, %c0_i32_0, %c0_i32_1 : i32, i32, i32
  }
  func.func @transform_4(%arg0: i32, %arg1: i32) -> (i32, i32, i32) {
    %c0_i32 = arith.constant 0 : i32
    %c0_i32_0 = arith.constant 0 : i32
    %c0_i32_1 = arith.constant 0 : i32
    %c0_i32_2 = arith.constant 0 : i32
    return %c0_i32, %c0_i32_0, %c0_i32_1 : i32, i32, i32
  }
  func.func @transform_5(%arg0: i32, %arg1: i32) -> (i32, i32, i32) {
    %c0_i32 = arith.constant 0 : i32
    %c0_i32_0 = arith.constant 0 : i32
    %c0_i32_1 = arith.constant 0 : i32
    %c0_i32_2 = arith.constant 0 : i32
    return %c0_i32, %c0_i32_0, %c0_i32_1 : i32, i32, i32
  }
  func.func @transform_6(%arg0: i32, %arg1: i32) -> (i32, i32, i32) {
    %c0_i32 = arith.constant 0 : i32
    %c0_i32_0 = arith.constant 0 : i32
    %c0_i32_1 = arith.constant 0 : i32
    %c0_i32_2 = arith.constant 0 : i32
    return %c0_i32, %c0_i32_0, %c0_i32_1 : i32, i32, i32
  }
  func.func @transform_7(%arg0: i32, %arg1: i32) -> (i32, i32, i32) {
    %c0_i32 = arith.constant 0 : i32
    %c0_i32_0 = arith.constant 0 : i32
    %c0_i32_1 = arith.constant 0 : i32
    %c0_i32_2 = arith.constant 0 : i32
    return %c0_i32, %c0_i32_0, %c0_i32_1 : i32, i32, i32
  }
  func.func @transform_8(%arg0: i32, %arg1: i32) -> (i32, i32, i32) {
    %c0_i32 = arith.constant 0 : i32
    %c0_i32_0 = arith.constant 0 : i32
    %c0_i32_1 = arith.constant 0 : i32
    %c0_i32_2 = arith.constant 0 : i32
    return %c0_i32, %c0_i32_0, %c0_i32_1 : i32, i32, i32
  }
  func.func @transform_9(%arg0: i32, %arg1: i32) -> (i32, i32, i32) {
    %c0_i32 = arith.constant 0 : i32
    %c0_i32_0 = arith.constant 0 : i32
    %c0_i32_1 = arith.constant 0 : i32
    %c0_i32_2 = arith.constant 0 : i32
    return %c0_i32, %c0_i32_0, %c0_i32_1 : i32, i32, i32
  }
  func.func @transform_10(%arg0: i32, %arg1: i32) -> (i32, i32) {
    %c0_i32 = arith.constant 0 : i32
    %c0_i32_0 = arith.constant 0 : i32
    %c0_i32_1 = arith.constant 0 : i32
    return %c0_i32, %c0_i32_0 : i32, i32
  }
  func.func @transform_11(%arg0: i32, %arg1: i32) -> (i32, i32) {
    %c0_i32 = arith.constant 0 : i32
    %c0_i32_0 = arith.constant 0 : i32
    %c0_i32_1 = arith.constant 0 : i32
    return %c0_i32, %c0_i32_0 : i32, i32
  }
  func.func @transform_12(%arg0: i32, %arg1: i32) -> (i32, i32) {
    %c0_i32 = arith.constant 0 : i32
    %c0_i32_0 = arith.constant 0 : i32
    %c0_i32_1 = arith.constant 0 : i32
    return %c0_i32, %c0_i32_0 : i32, i32
  }
  func.func @transform_13(%arg0: i32, %arg1: i32) -> (i32, i32) {
    %c0_i32 = arith.constant 0 : i32
    %c0_i32_0 = arith.constant 0 : i32
    %c0_i32_1 = arith.constant 0 : i32
    return %c0_i32, %c0_i32_0 : i32, i32
  }
  func.func @transform_14(%arg0: i32, %arg1: i32) -> (i32, i32) {
    %c0_i32 = arith.constant 0 : i32
    %c0_i32_0 = arith.constant 0 : i32
    %c0_i32_1 = arith.constant 0 : i32
    return %c0_i32, %c0_i32_0 : i32, i32
  }
  func.func @transform_15(%arg0: i32, %arg1: i32) -> (i32, i32) {
    %c0_i32 = arith.constant 0 : i32
    %c0_i32_0 = arith.constant 0 : i32
    %c0_i32_1 = arith.constant 0 : i32
    return %c0_i32, %c0_i32_0 : i32, i32
  }
  func.func @transform_16(%arg0: i32, %arg1: i32) -> (i32, i32) {
    %c0_i32 = arith.constant 0 : i32
    %c0_i32_0 = arith.constant 0 : i32
    %c0_i32_1 = arith.constant 0 : i32
    return %c0_i32, %c0_i32_0 : i32, i32
  }
  func.func @transform_17(%arg0: i32, %arg1: i32) -> (i32, i32) {
    %c0_i32 = arith.constant 0 : i32
    %c0_i32_0 = arith.constant 0 : i32
    %c0_i32_1 = arith.constant 0 : i32
    return %c0_i32, %c0_i32_0 : i32, i32
  }
  func.func @transform_18(%arg0: i32, %arg1: i32) -> (i32, i32) {
    %c0_i32 = arith.constant 0 : i32
    %c0_i32_0 = arith.constant 0 : i32
    %c0_i32_1 = arith.constant 0 : i32
    return %c0_i32, %c0_i32_0 : i32, i32
  }
  func.func @transform_19(%arg0: i32, %arg1: i32) -> (i32, i32, i32) {
    %c0_i32 = arith.constant 0 : i32
    %c0_i32_0 = arith.constant 0 : i32
    return %arg0, %arg1, %c0_i32 : i32, i32, i32
  }
}

</mosaic_0001>

<llo_original>
// kernel: tpu_custom_call.1
$region0: #{tpu_custom_call.1}
  #allocation0 [shape = 'u32[]', space=smem, size = 0x4, offset = 0x4, fixed_abs, tag = 'smem constant byte address 0x4 - core index']
  #allocation1 [shape = 'u32[144,128]{1,0:T(1,128)}', space=vmem, size = 0x12000, scoped, tag = 'internal scratch']
  %s0 = inlined_call_operand.vmem [shape: f32[2,8,32], index: 0, kind: input, shape index: {}]
  %s1 = inlined_call_operand.vmem [shape: f32[2,8,32], index: 1, kind: input, shape index: {}]
  %s2 = inlined_call_operand.vmem [shape: f32[2,1,8], index: 2, kind: input, shape index: {}]
  %s3 = inlined_call_operand.vmem [shape: bf16[4,32,8], index: 3, kind: input, shape index: {}]
  %s4 = inlined_call_operand.vmem [shape: f32[4,1,8], index: 4, kind: input, shape index: {}]
  %s5 = inlined_call_operand.vmem [shape: bf16[4,32,8], index: 5, kind: input, shape index: {}]
  %s6 = inlined_call_operand.vmem [shape: f32[4,1,8], index: 6, kind: input, shape index: {}]
  %s7 = inlined_call_operand.vmem [shape: bf16[4,32,8], index: 7, kind: input, shape index: {}]
  %s8 = inlined_call_operand.vmem [shape: f32[4,1,8], index: 8, kind: input, shape index: {}]
  %s9 = inlined_call_operand.vmem [shape: bf16[4,8,32], index: 9, kind: input, shape index: {}]
  %s10 = inlined_call_operand.vmem [shape: f32[1,32], index: 10, kind: input, shape index: {}]
  %s11 = inlined_call_operand.vmem [shape: bf16[32,128], index: 11, kind: input, shape index: {}]
  %s12 = inlined_call_operand.vmem [shape: f32[1,128], index: 12, kind: input, shape index: {}]
  %s13 = inlined_call_operand.vmem [shape: bf16[128,32], index: 13, kind: input, shape index: {}]
  %s14 = inlined_call_operand.vmem [shape: f32[1,32], index: 14, kind: input, shape index: {}]
  %s15 = inlined_call_operand.vmem [shape: f32[1,32], index: 15, kind: input, shape index: {}]
  %s16 = inlined_call_operand.vmem [shape: f32[1,32], index: 16, kind: input, shape index: {}]
  %s17 = inlined_call_operand.vmem [shape: f32[1,32], index: 17, kind: input, shape index: {}]
  %s18 = inlined_call_operand.vmem [shape: f32[1,32], index: 18, kind: input, shape index: {}]
  %s19 = inlined_call_operand.hbm [shape: f32[2,8,32], index: 19, kind: output, shape index: {}]
  %s20 = sld [smem:[#allocation0]]
  $region109: #{tpu_custom_call.1} parent=0
    _
  %s22 = ssub.s32 1, %s20
  %s23 = scalar_select 0, %s22, %s20
  $region1: #{tpu_custom_call.1} parent=0
    #allocation2 [shape = 'u8[8192]{0}', space=vmem, size = 0x2000, scoped, tag = 'output window, operand 0']
    #allocation3 [shape = 's32[2]{0}', space=sflag, size = 0x8, scoped, tag = 'scoped memory for tpu_custom_call.1']
    %24 = vsyncpa [#allocation3], 0
    %s25 = scalar_lea.sflag [#allocation3], 1
    %26 = vsyncpa %s25, 0
    loop: start=0, step=1, limit=4
    $region2: #{tpu_custom_call.1} parent=1 // loop_pre_header
      _
    $region3: #{tpu_custom_call.1} parent=1 // loop_header
      %s28 = sphi 0, %s32
      %p29 = scmp.ge.s32.totalorder %s28, 4
      %s35 = sphi 0, %s47
      %s36 = sphi 0, %s43
      %s37 = sphi 0, %s35
      %s38 = sphi 0, %s36
      %s39 = sphi 0, %s37
      %s40 = sphi 0, %s38
      %s50 = sphi 0, %s52
      %s53 = sphi 0, %s50
      %s54 = sphi 0, %s53
      %s70 = sphi 0, %s54
      %s78 = sphi 0, %s80
      %s81 = sphi 0, %s78
      %s82 = sphi 0, %s81
      %s98 = sphi 0, %s82
      %s104 = sphi 0, %s106
      %s107 = sphi 0, %s104
      %s108 = sphi 0, %s107
      %s124 = sphi 0, %s108
      %s128 = sphi 0, %s128
      %s130 = sphi 0, %s128
      %s131 = sphi 0, %s130
      %s145 = sphi 0, %s131
      %s149 = sphi 0, %s149
      %s151 = sphi 0, %s149
      %s152 = sphi 0, %s151
      %s166 = sphi 0, %s152
      %s170 = sphi 0, %s170
      %s172 = sphi 0, %s170
      %s173 = sphi 0, %s172
      %s187 = sphi 0, %s173
      %s191 = sphi 0, %s191
      %s193 = sphi 0, %s191
      %s194 = sphi 0, %s193
      %s208 = sphi 0, %s194
      %s212 = sphi 0, %s212
      %s214 = sphi 0, %s212
      %s215 = sphi 0, %s214
      %s229 = sphi 0, %s215
      %s233 = sphi 0, %s233
      %s235 = sphi 0, %s233
      %s236 = sphi 0, %s235
      %s250 = sphi 0, %s236
      %s254 = sphi 0, %s254
      %s256 = sphi 0, %s254
      %s257 = sphi 0, %s256
      %s271 = sphi 0, %s257
      %s275 = sphi 0, %s275
      %s277 = sphi 0, %s275
      %s278 = sphi 0, %s277
      %s292 = sphi 0, %s278
      %s296 = sphi 0, %s296
      %s298 = sphi 0, %s296
      %s299 = sphi 0, %s298
      %s313 = sphi 0, %s299
      %s317 = sphi 0, %s317
      %s319 = sphi 0, %s317
      %s320 = sphi 0, %s319
      %s334 = sphi 0, %s320
      %s338 = sphi 0, %s338
      %s340 = sphi 0, %s338
      %s341 = sphi 0, %s340
      %s355 = sphi 0, %s341
      %s359 = sphi 0, %s359
      %s361 = sphi 0, %s359
      %s362 = sphi 0, %s361
      %s376 = sphi 0, %s362
      %s380 = sphi 0, %s380
      %s382 = sphi 0, %s380
      %s383 = sphi 0, %s382
      %s397 = sphi 0, %s383
      %s401 = sphi 0, %s401
      %s403 = sphi 0, %s401
      %s404 = sphi 0, %s403
      %s418 = sphi 0, %s404
      %s422 = sphi 0, %s422
      %s424 = sphi 0, %s422
      %s425 = sphi 0, %s424
      %s439 = sphi 0, %s425
      %s443 = sphi 0, %s443
      %s445 = sphi 0, %s443
      %s446 = sphi 0, %s445
      %s460 = sphi 0, %s446
      %s468 = sphi 0, %s470
      %s471 = sphi 0, %s468
      %s472 = sphi 0, %s471
      %s488 = sphi 0, %s472
    $region4: #{tpu_custom_call.1} parent=1 // loop_header_branch
      %31 = sbr.rel (%p29) target = $region8
    $region5: #{tpu_custom_call.1} parent=1 // loop_body
      %s33 = ssub.s32 %s28, 1
      %s34 = ssub.s32 %s28, 2
      %s41 = sadd.s32 1, %s36
      %p42 = scmp.ge.s32.totalorder %s41, 1
      %s43 = scalar_select %p42, 0, %s41
      %s44 = sadd.s32 1, %s35
      %s45 = scalar_select %p42, %s44, %s35
      %p46 = scmp.ge.s32.totalorder %s45, 2
      %s47 = scalar_select %p46, 0, %s45
      %s48 = ssub.s32 %s35, %s47
      %p49 = scmp.eq.s32.totalorder %s48, 0
      %s51 = sadd.s32 %s50, 1
      %s52 = scalar_select %p49, %s50, %s51
      %p55 = pneg %p49
      %p56 = scmp.eq.s32.totalorder %s28, 1
      %p57 = por %p55, %p56
      %p58 = scmp.ne.s32.totalorder %s50, %s53
      %p59 = scmp.eq.s32.totalorder %s28, 0
      %p60 = por %p58, %p59
      %p61 = scmp.ne.s32.totalorder %s50, %s53
      %p62 = scmp.eq.s32.totalorder %s33, 1
      %p63 = por %p61, %p62
      %p64 = scmp.ne.s32.totalorder %s53, %s54
      %p65 = scmp.eq.s32.totalorder %s33, 0
      %p66 = por %p64, %p65
      %p67 = scmp.ne.s32.totalorder %s53, %s54
      %p68 = scmp.eq.s32.totalorder %s34, 1
      %p69 = por %p67, %p68
      %p71 = scmp.ne.s32.totalorder %s54, %s70
      %p72 = scmp.eq.s32.totalorder %s34, 0
      %p73 = por %p71, %p72
      %s74 = ssub.s32 %s35, %s47
      %s75 = ssub.s32 %s36, %s43
      %s76 = sor.u32 %s74, %s75
      %p77 = scmp.eq.s32.totalorder %s76, 0
      %s79 = sadd.s32 %s78, 1
      %s80 = scalar_select %p77, %s78, %s79
      %p83 = pneg %p77
      %p84 = scmp.eq.s32.totalorder %s28, 1
      %p85 = por %p83, %p84
      %p86 = scmp.ne.s32.totalorder %s78, %s81
      %p87 = scmp.eq.s32.totalorder %s28, 0
      %p88 = por %p86, %p87
      %p89 = scmp.ne.s32.totalorder %s78, %s81
      %p90 = scmp.eq.s32.totalorder %s33, 1
      %p91 = por %p89, %p90
      %p92 = scmp.ne.s32.totalorder %s81, %s82
      %p93 = scmp.eq.s32.totalorder %s33, 0
      %p94 = por %p92, %p93
      %p95 = scmp.ne.s32.totalorder %s81, %s82
      %p96 = scmp.eq.s32.totalorder %s34, 1
      %p97 = por %p95, %p96
      %p99 = scmp.ne.s32.totalorder %s82, %s98
      %p100 = scmp.eq.s32.totalorder %s34, 0
      %p101 = por %p99, %p100
      %s102 = ssub.s32 %s35, %s47
      %p103 = scmp.eq.s32.totalorder %s102, 0
      %s105 = sadd.s32 %s104, 1
      %s106 = scalar_select %p103, %s104, %s105
      %p109 = pneg %p103
      %p110 = scmp.eq.s32.totalorder %s28, 1
      %p111 = por %p109, %p110
      %p112 = scmp.ne.s32.totalorder %s104, %s107
      %p113 = scmp.eq.s32.totalorder %s28, 0
      %p114 = por %p112, %p113
      %p115 = scmp.ne.s32.totalorder %s104, %s107
      %p116 = scmp.eq.s32.totalorder %s33, 1
      %p117 = por %p115, %p116
      %p118 = scmp.ne.s32.totalorder %s107, %s108
      %p119 = scmp.eq.s32.totalorder %s33, 0
      %p120 = por %p118, %p119
      %p121 = scmp.ne.s32.totalorder %s107, %s108
      %p122 = scmp.eq.s32.totalorder %s34, 1
      %p123 = por %p121, %p122
      %p125 = scmp.ne.s32.totalorder %s108, %s124
      %p126 = scmp.eq.s32.totalorder %s34, 0
      %p127 = por %p125, %p126
      %s129 = sadd.s32 %s128, 1
      %p132 = scmp.eq.s32.totalorder %s28, 1
      %p133 = scmp.ne.s32.totalorder %s128, %s130
      %p134 = scmp.eq.s32.totalorder %s28, 0
      %p135 = por %p133, %p134
      %p136 = scmp.ne.s32.totalorder %s128, %s130
      %p137 = scmp.eq.s32.totalorder %s33, 1
      %p138 = por %p136, %p137
      %p139 = scmp.ne.s32.totalorder %s130, %s131
      %p140 = scmp.eq.s32.totalorder %s33, 0
      %p141 = por %p139, %p140
      %p142 = scmp.ne.s32.totalorder %s130, %s131
      %p143 = scmp.eq.s32.totalorder %s34, 1
      %p144 = por %p142, %p143
      %p146 = scmp.ne.s32.totalorder %s131, %s145
      %p147 = scmp.eq.s32.totalorder %s34, 0
      %p148 = por %p146, %p147
      %s150 = sadd.s32 %s149, 1
      %p153 = scmp.eq.s32.totalorder %s28, 1
      %p154 = scmp.ne.s32.totalorder %s149, %s151
      %p155 = scmp.eq.s32.totalorder %s28, 0
      %p156 = por %p154, %p155
      %p157 = scmp.ne.s32.totalorder %s149, %s151
      %p158 = scmp.eq.s32.totalorder %s33, 1
      %p159 = por %p157, %p158
      %p160 = scmp.ne.s32.totalorder %s151, %s152
      %p161 = scmp.eq.s32.totalorder %s33, 0
      %p162 = por %p160, %p161
      %p163 = scmp.ne.s32.totalorder %s151, %s152
      %p164 = scmp.eq.s32.totalorder %s34, 1
      %p165 = por %p163, %p164
      %p167 = scmp.ne.s32.totalorder %s152, %s166
      %p168 = scmp.eq.s32.totalorder %s34, 0
      %p169 = por %p167, %p168
      %s171 = sadd.s32 %s170, 1
      %p174 = scmp.eq.s32.totalorder %s28, 1
      %p175 = scmp.ne.s32.totalorder %s170, %s172
      %p176 = scmp.eq.s32.totalorder %s28, 0
      %p177 = por %p175, %p176
      %p178 = scmp.ne.s32.totalorder %s170, %s172
      %p179 = scmp.eq.s32.totalorder %s33, 1
      %p180 = por %p178, %p179
      %p181 = scmp.ne.s32.totalorder %s172, %s173
      %p182 = scmp.eq.s32.totalorder %s33, 0
      %p183 = por %p181, %p182
      %p184 = scmp.ne.s32.totalorder %s172, %s173
      %p185 = scmp.eq.s32.totalorder %s34, 1
      %p186 = por %p184, %p185
      %p188 = scmp.ne.s32.totalorder %s173, %s187
      %p189 = scmp.eq.s32.totalorder %s34, 0
      %p190 = por %p188, %p189
      %s192 = sadd.s32 %s191, 1
      %p195 = scmp.eq.s32.totalorder %s28, 1
      %p196 = scmp.ne.s32.totalorder %s191, %s193
      %p197 = scmp.eq.s32.totalorder %s28, 0
      %p198 = por %p196, %p197
      %p199 = scmp.ne.s32.totalorder %s191, %s193
      %p200 = scmp.eq.s32.totalorder %s33, 1
      %p201 = por %p199, %p200
      %p202 = scmp.ne.s32.totalorder %s193, %s194
      %p203 = scmp.eq.s32.totalorder %s33, 0
      %p204 = por %p202, %p203
      %p205 = scmp.ne.s32.totalorder %s193, %s194
      %p206 = scmp.eq.s32.totalorder %s34, 1
      %p207 = por %p205, %p206
      %p209 = scmp.ne.s32.totalorder %s194, %s208
      %p210 = scmp.eq.s32.totalorder %s34, 0
      %p211 = por %p209, %p210
      %s213 = sadd.s32 %s212, 1
      %p216 = scmp.eq.s32.totalorder %s28, 1
      %p217 = scmp.ne.s32.totalorder %s212, %s214
      %p218 = scmp.eq.s32.totalorder %s28, 0
      %p219 = por %p217, %p218
      %p220 = scmp.ne.s32.totalorder %s212, %s214
      %p221 = scmp.eq.s32.totalorder %s33, 1
      %p222 = por %p220, %p221
      %p223 = scmp.ne.s32.totalorder %s214, %s215
      %p224 = scmp.eq.s32.totalorder %s33, 0
      %p225 = por %p223, %p224
      %p226 = scmp.ne.s32.totalorder %s214, %s215
      %p227 = scmp.eq.s32.totalorder %s34, 1
      %p228 = por %p226, %p227
      %p230 = scmp.ne.s32.totalorder %s215, %s229
      %p231 = scmp.eq.s32.totalorder %s34, 0
      %p232 = por %p230, %p231
      %s234 = sadd.s32 %s233, 1
      %p237 = scmp.eq.s32.totalorder %s28, 1
      %p238 = scmp.ne.s32.totalorder %s233, %s235
      %p239 = scmp.eq.s32.totalorder %s28, 0
      %p240 = por %p238, %p239
      %p241 = scmp.ne.s32.totalorder %s233, %s235
      %p242 = scmp.eq.s32.totalorder %s33, 1
      %p243 = por %p241, %p242
      %p244 = scmp.ne.s32.totalorder %s235, %s236
      %p245 = scmp.eq.s32.totalorder %s33, 0
      %p246 = por %p244, %p245
      %p247 = scmp.ne.s32.totalorder %s235, %s236
      %p248 = scmp.eq.s32.totalorder %s34, 1
      %p249 = por %p247, %p248
      %p251 = scmp.ne.s32.totalorder %s236, %s250
      %p252 = scmp.eq.s32.totalorder %s34, 0
      %p253 = por %p251, %p252
      %s255 = sadd.s32 %s254, 1
      %p258 = scmp.eq.s32.totalorder %s28, 1
      %p259 = scmp.ne.s32.totalorder %s254, %s256
      %p260 = scmp.eq.s32.totalorder %s28, 0
      %p261 = por %p259, %p260
      %p262 = scmp.ne.s32.totalorder %s254, %s256
      %p263 = scmp.eq.s32.totalorder %s33, 1
      %p264 = por %p262, %p263
      %p265 = scmp.ne.s32.totalorder %s256, %s257
      %p266 = scmp.eq.s32.totalorder %s33, 0
      %p267 = por %p265, %p266
      %p268 = scmp.ne.s32.totalorder %s256, %s257
      %p269 = scmp.eq.s32.totalorder %s34, 1
      %p270 = por %p268, %p269
      %p272 = scmp.ne.s32.totalorder %s257, %s271
      %p273 = scmp.eq.s32.totalorder %s34, 0
      %p274 = por %p272, %p273
      %s276 = sadd.s32 %s275, 1
      %p279 = scmp.eq.s32.totalorder %s28, 1
      %p280 = scmp.ne.s32.totalorder %s275, %s277
      %p281 = scmp.eq.s32.totalorder %s28, 0
      %p282 = por %p280, %p281
      %p283 = scmp.ne.s32.totalorder %s275, %s277
      %p284 = scmp.eq.s32.totalorder %s33, 1
      %p285 = por %p283, %p284
      %p286 = scmp.ne.s32.totalorder %s277, %s278
      %p287 = scmp.eq.s32.totalorder %s33, 0
      %p288 = por %p286, %p287
      %p289 = scmp.ne.s32.totalorder %s277, %s278
      %p290 = scmp.eq.s32.totalorder %s34, 1
      %p291 = por %p289, %p290
      %p293 = scmp.ne.s32.totalorder %s278, %s292
      %p294 = scmp.eq.s32.totalorder %s34, 0
      %p295 = por %p293, %p294
      %s297 = sadd.s32 %s296, 1
      %p300 = scmp.eq.s32.totalorder %s28, 1
      %p301 = scmp.ne.s32.totalorder %s296, %s298
      %p302 = scmp.eq.s32.totalorder %s28, 0
      %p303 = por %p301, %p302
      %p304 = scmp.ne.s32.totalorder %s296, %s298
      %p305 = scmp.eq.s32.totalorder %s33, 1
      %p306 = por %p304, %p305
      %p307 = scmp.ne.s32.totalorder %s298, %s299
      %p308 = scmp.eq.s32.totalorder %s33, 0
      %p309 = por %p307, %p308
      %p310 = scmp.ne.s32.totalorder %s298, %s299
      %p311 = scmp.eq.s32.totalorder %s34, 1
      %p312 = por %p310, %p311
      %p314 = scmp.ne.s32.totalorder %s299, %s313
      %p315 = scmp.eq.s32.totalorder %s34, 0
      %p316 = por %p314, %p315
      %s318 = sadd.s32 %s317, 1
      %p321 = scmp.eq.s32.totalorder %s28, 1
      %p322 = scmp.ne.s32.totalorder %s317, %s319
      %p323 = scmp.eq.s32.totalorder %s28, 0
      %p324 = por %p322, %p323
      %p325 = scmp.ne.s32.totalorder %s317, %s319
      %p326 = scmp.eq.s32.totalorder %s33, 1
      %p327 = por %p325, %p326
      %p328 = scmp.ne.s32.totalorder %s319, %s320
      %p329 = scmp.eq.s32.totalorder %s33, 0
      %p330 = por %p328, %p329
      %p331 = scmp.ne.s32.totalorder %s319, %s320
      %p332 = scmp.eq.s32.totalorder %s34, 1
      %p333 = por %p331, %p332
      %p335 = scmp.ne.s32.totalorder %s320, %s334
      %p336 = scmp.eq.s32.totalorder %s34, 0
      %p337 = por %p335, %p336
      %s339 = sadd.s32 %s338, 1
      %p342 = scmp.eq.s32.totalorder %s28, 1
      %p343 = scmp.ne.s32.totalorder %s338, %s340
      %p344 = scmp.eq.s32.totalorder %s28, 0
      %p345 = por %p343, %p344
      %p346 = scmp.ne.s32.totalorder %s338, %s340
      %p347 = scmp.eq.s32.totalorder %s33, 1
      %p348 = por %p346, %p347
      %p349 = scmp.ne.s32.totalorder %s340, %s341
      %p350 = scmp.eq.s32.totalorder %s33, 0
      %p351 = por %p349, %p350
      %p352 = scmp.ne.s32.totalorder %s340, %s341
      %p353 = scmp.eq.s32.totalorder %s34, 1
      %p354 = por %p352, %p353
      %p356 = scmp.ne.s32.totalorder %s341, %s355
      %p357 = scmp.eq.s32.totalorder %s34, 0
      %p358 = por %p356, %p357
      %s360 = sadd.s32 %s359, 1
      %p363 = scmp.eq.s32.totalorder %s28, 1
      %p364 = scmp.ne.s32.totalorder %s359, %s361
      %p365 = scmp.eq.s32.totalorder %s28, 0
      %p366 = por %p364, %p365
      %p367 = scmp.ne.s32.totalorder %s359, %s361
      %p368 = scmp.eq.s32.totalorder %s33, 1
      %p369 = por %p367, %p368
      %p370 = scmp.ne.s32.totalorder %s361, %s362
      %p371 = scmp.eq.s32.totalorder %s33, 0
      %p372 = por %p370, %p371
      %p373 = scmp.ne.s32.totalorder %s361, %s362
      %p374 = scmp.eq.s32.totalorder %s34, 1
      %p375 = por %p373, %p374
      %p377 = scmp.ne.s32.totalorder %s362, %s376
      %p378 = scmp.eq.s32.totalorder %s34, 0
      %p379 = por %p377, %p378
      %s381 = sadd.s32 %s380, 1
      %p384 = scmp.eq.s32.totalorder %s28, 1
      %p385 = scmp.ne.s32.totalorder %s380, %s382
      %p386 = scmp.eq.s32.totalorder %s28, 0
      %p387 = por %p385, %p386
      %p388 = scmp.ne.s32.totalorder %s380, %s382
      %p389 = scmp.eq.s32.totalorder %s33, 1
      %p390 = por %p388, %p389
      %p391 = scmp.ne.s32.totalorder %s382, %s383
      %p392 = scmp.eq.s32.totalorder %s33, 0
      %p393 = por %p391, %p392
      %p394 = scmp.ne.s32.totalorder %s382, %s383
      %p395 = scmp.eq.s32.totalorder %s34, 1
      %p396 = por %p394, %p395
      %p398 = scmp.ne.s32.totalorder %s383, %s397
      %p399 = scmp.eq.s32.totalorder %s34, 0
      %p400 = por %p398, %p399
      %s402 = sadd.s32 %s401, 1
      %p405 = scmp.eq.s32.totalorder %s28, 1
      %p406 = scmp.ne.s32.totalorder %s401, %s403
      %p407 = scmp.eq.s32.totalorder %s28, 0
      %p408 = por %p406, %p407
      %p409 = scmp.ne.s32.totalorder %s401, %s403
      %p410 = scmp.eq.s32.totalorder %s33, 1
      %p411 = por %p409, %p410
      %p412 = scmp.ne.s32.totalorder %s403, %s404
      %p413 = scmp.eq.s32.totalorder %s33, 0
      %p414 = por %p412, %p413
      %p415 = scmp.ne.s32.totalorder %s403, %s404
      %p416 = scmp.eq.s32.totalorder %s34, 1
      %p417 = por %p415, %p416
      %p419 = scmp.ne.s32.totalorder %s404, %s418
      %p420 = scmp.eq.s32.totalorder %s34, 0
      %p421 = por %p419, %p420
      %s423 = sadd.s32 %s422, 1
      %p426 = scmp.eq.s32.totalorder %s28, 1
      %p427 = scmp.ne.s32.totalorder %s422, %s424
      %p428 = scmp.eq.s32.totalorder %s28, 0
      %p429 = por %p427, %p428
      %p430 = scmp.ne.s32.totalorder %s422, %s424
      %p431 = scmp.eq.s32.totalorder %s33, 1
      %p432 = por %p430, %p431
      %p433 = scmp.ne.s32.totalorder %s424, %s425
      %p434 = scmp.eq.s32.totalorder %s33, 0
      %p435 = por %p433, %p434
      %p436 = scmp.ne.s32.totalorder %s424, %s425
      %p437 = scmp.eq.s32.totalorder %s34, 1
      %p438 = por %p436, %p437
      %p440 = scmp.ne.s32.totalorder %s425, %s439
      %p441 = scmp.eq.s32.totalorder %s34, 0
      %p442 = por %p440, %p441
      %s444 = sadd.s32 %s443, 1
      %p447 = scmp.eq.s32.totalorder %s28, 1
      %p448 = scmp.ne.s32.totalorder %s443, %s445
      %p449 = scmp.eq.s32.totalorder %s28, 0
      %p450 = por %p448, %p449
      %p451 = scmp.ne.s32.totalorder %s443, %s445
      %p452 = scmp.eq.s32.totalorder %s33, 1
      %p453 = por %p451, %p452
      %p454 = scmp.ne.s32.totalorder %s445, %s446
      %p455 = scmp.eq.s32.totalorder %s33, 0
      %p456 = por %p454, %p455
      %p457 = scmp.ne.s32.totalorder %s445, %s446
      %p458 = scmp.eq.s32.totalorder %s34, 1
      %p459 = por %p457, %p458
      %p461 = scmp.ne.s32.totalorder %s446, %s460
      %p462 = scmp.eq.s32.totalorder %s34, 0
      %p463 = por %p461, %p462
      %s464 = ssub.s32 %s35, %s47
      %s465 = ssub.s32 %s36, %s43
      %s466 = sor.u32 %s464, %s465
      %p467 = scmp.eq.s32.totalorder %s466, 0
      %s469 = sadd.s32 %s468, 1
      %s470 = scalar_select %p467, %s468, %s469
      %p473 = pneg %p467
      %p474 = scmp.eq.s32.totalorder %s28, 1
      %p475 = por %p473, %p474
      %p476 = scmp.ne.s32.totalorder %s468, %s471
      %p477 = scmp.eq.s32.totalorder %s28, 0
      %p478 = por %p476, %p477
      %p479 = scmp.ne.s32.totalorder %s468, %s471
      %p480 = scmp.eq.s32.totalorder %s33, 1
      %p481 = por %p479, %p480
      %p482 = scmp.ne.s32.totalorder %s471, %s472
      %p483 = scmp.eq.s32.totalorder %s33, 0
      %p484 = por %p482, %p483
      %p485 = scmp.ne.s32.totalorder %s471, %s472
      %p486 = scmp.eq.s32.totalorder %s34, 1
      %p487 = por %p485, %p486
      %p489 = scmp.ne.s32.totalorder %s472, %s488
      %p490 = scmp.eq.s32.totalorder %s34, 0
      %p491 = por %p489, %p490
      %p492 = scmp.le.s32.totalorder 1, %s28
      %p493 = scmp.lt.s32.totalorder %s28, 3
      %p494 = pnand %p492, %p493
      %p495 = pneg %p494
      // Predicated region
      $region9: #{tpu_custom_call.1} parent=5 // pred_check
        _
      $region10: #{tpu_custom_call.1} parent=5 // pred_check_branch
        %497 = sbr.rel (%p494) target = $region12
      $region11: #{tpu_custom_call.1} parent=5 // pred_region
        %s498 = ssub.s32 %s28, 1
        // Predicated region
        $region13: #{tpu_custom_call.1} parent=11 // pred_check
          %p499 = pneg %p141
        $region14: #{tpu_custom_call.1} parent=11 // pred_check_branch
          %501 = sbr.rel (%p499) target = $region16
        $region15: #{tpu_custom_call.1} parent=11 // pred_region
          _
        $region16: #{tpu_custom_call.1} parent=11 // pred_fallthru
          _
        // Predicated region
        $region17: #{tpu_custom_call.1} parent=11 // pred_check
          %p502 = pneg %p162
        $region18: #{tpu_custom_call.1} parent=11 // pred_check_branch
          %504 = sbr.rel (%p502) target = $region20
        $region19: #{tpu_custom_call.1} parent=11 // pred_region
          _
        $region20: #{tpu_custom_call.1} parent=11 // pred_fallthru
          _
        // Predicated region
        $region21: #{tpu_custom_call.1} parent=11 // pred_check
          %p505 = pneg %p183
        $region22: #{tpu_custom_call.1} parent=11 // pred_check_branch
          %507 = sbr.rel (%p505) target = $region24
        $region23: #{tpu_custom_call.1} parent=11 // pred_region
          _
        $region24: #{tpu_custom_call.1} parent=11 // pred_fallthru
          _
        // Predicated region
        $region25: #{tpu_custom_call.1} parent=11 // pred_check
          %p508 = pneg %p204
        $region26: #{tpu_custom_call.1} parent=11 // pred_check_branch
          %510 = sbr.rel (%p508) target = $region28
        $region27: #{tpu_custom_call.1} parent=11 // pred_region
          _
        $region28: #{tpu_custom_call.1} parent=11 // pred_fallthru
          _
        // Predicated region
        $region29: #{tpu_custom_call.1} parent=11 // pred_check
          %p511 = pneg %p225
        $region30: #{tpu_custom_call.1} parent=11 // pred_check_branch
          %513 = sbr.rel (%p511) target = $region32
        $region31: #{tpu_custom_call.1} parent=11 // pred_region
          _
        $region32: #{tpu_custom_call.1} parent=11 // pred_fallthru
          _
        // Predicated region
        $region33: #{tpu_custom_call.1} parent=11 // pred_check
          %p514 = pneg %p246
        $region34: #{tpu_custom_call.1} parent=11 // pred_check_branch
          %516 = sbr.rel (%p514) target = $region36
        $region35: #{tpu_custom_call.1} parent=11 // pred_region
          _
        $region36: #{tpu_custom_call.1} parent=11 // pred_fallthru
          _
        // Predicated region
        $region37: #{tpu_custom_call.1} parent=11 // pred_check
          %p517 = pneg %p267
        $region38: #{tpu_custom_call.1} parent=11 // pred_check_branch
          %519 = sbr.rel (%p517) target = $region40
        $region39: #{tpu_custom_call.1} parent=11 // pred_region
          _
        $region40: #{tpu_custom_call.1} parent=11 // pred_fallthru
          _
        // Predicated region
        $region41: #{tpu_custom_call.1} parent=11 // pred_check
          %p520 = pneg %p288
        $region42: #{tpu_custom_call.1} parent=11 // pred_check_branch
          %522 = sbr.rel (%p520) target = $region44
        $region43: #{tpu_custom_call.1} parent=11 // pred_region
          _
        $region44: #{tpu_custom_call.1} parent=11 // pred_fallthru
          _
        // Predicated region
        $region45: #{tpu_custom_call.1} parent=11 // pred_check
          %p523 = pneg %p309
        $region46: #{tpu_custom_call.1} parent=11 // pred_check_branch
          %525 = sbr.rel (%p523) target = $region48
        $region47: #{tpu_custom_call.1} parent=11 // pred_region
          _
        $region48: #{tpu_custom_call.1} parent=11 // pred_fallthru
          _
        // Predicated region
        $region49: #{tpu_custom_call.1} parent=11 // pred_check
          %p526 = pneg %p330
        $region50: #{tpu_custom_call.1} parent=11 // pred_check_branch
          %528 = sbr.rel (%p526) target = $region52
        $region51: #{tpu_custom_call.1} parent=11 // pred_region
          _
        $region52: #{tpu_custom_call.1} parent=11 // pred_fallthru
          _
        // Predicated region
        $region53: #{tpu_custom_call.1} parent=11 // pred_check
          %p529 = pneg %p351
        $region54: #{tpu_custom_call.1} parent=11 // pred_check_branch
          %531 = sbr.rel (%p529) target = $region56
        $region55: #{tpu_custom_call.1} parent=11 // pred_region
          _
        $region56: #{tpu_custom_call.1} parent=11 // pred_fallthru
          _
        // Predicated region
        $region57: #{tpu_custom_call.1} parent=11 // pred_check
          %p532 = pneg %p372
        $region58: #{tpu_custom_call.1} parent=11 // pred_check_branch
          %534 = sbr.rel (%p532) target = $region60
        $region59: #{tpu_custom_call.1} parent=11 // pred_region
          _
        $region60: #{tpu_custom_call.1} parent=11 // pred_fallthru
          _
        // Predicated region
        $region61: #{tpu_custom_call.1} parent=11 // pred_check
          %p535 = pneg %p393
        $region62: #{tpu_custom_call.1} parent=11 // pred_check_branch
          %537 = sbr.rel (%p535) target = $region64
        $region63: #{tpu_custom_call.1} parent=11 // pred_region
          _
        $region64: #{tpu_custom_call.1} parent=11 // pred_fallthru
          _
        // Predicated region
        $region65: #{tpu_custom_call.1} parent=11 // pred_check
          %p538 = pneg %p414
        $region66: #{tpu_custom_call.1} parent=11 // pred_check_branch
          %540 = sbr.rel (%p538) target = $region68
        $region67: #{tpu_custom_call.1} parent=11 // pred_region
          _
        $region68: #{tpu_custom_call.1} parent=11 // pred_fallthru
          _
        // Predicated region
        $region69: #{tpu_custom_call.1} parent=11 // pred_check
          %p541 = pneg %p435
        $region70: #{tpu_custom_call.1} parent=11 // pred_check_branch
          %543 = sbr.rel (%p541) target = $region72
        $region71: #{tpu_custom_call.1} parent=11 // pred_region
          _
        $region72: #{tpu_custom_call.1} parent=11 // pred_fallthru
          _
        // Predicated region
        $region73: #{tpu_custom_call.1} parent=11 // pred_check
          %p544 = pneg %p456
        $region74: #{tpu_custom_call.1} parent=11 // pred_check_branch
          %546 = sbr.rel (%p544) target = $region76
        $region75: #{tpu_custom_call.1} parent=11 // pred_region
          _
        $region76: #{tpu_custom_call.1} parent=11 // pred_fallthru
          _
      $region12: #{tpu_custom_call.1} parent=5 // pred_fallthru
        _
      %p547 = scmp.lt.s32.totalorder %s28, 2
      // Predicated region
      $region77: #{tpu_custom_call.1} parent=5 // pred_check
        %p548 = pneg %p547
      $region78: #{tpu_custom_call.1} parent=5 // pred_check_branch
        %550 = sbr.rel (%p548) target = $region80
      $region79: #{tpu_custom_call.1} parent=5 // pred_region
        // Predicated region
        $region81: #{tpu_custom_call.1} parent=79 // pred_check
          %p551 = pneg %p60
        $region82: #{tpu_custom_call.1} parent=79 // pred_check_branch
          %553 = sbr.rel (%p551) target = $region84
        $region83: #{tpu_custom_call.1} parent=79 // pred_region
          %p554 = scmp.lt.s32.totalorder %s35, 1
          %s555 = scalar_select %p554, %s35, 1
          %s556 = smul.addr %s555, 8
          %s557 = scalar_lea.vmem %s0, %s556
        $region84: #{tpu_custom_call.1} parent=79 // pred_fallthru
          _
        // Predicated region
        $region85: #{tpu_custom_call.1} parent=79 // pred_check
          %p558 = pneg %p88
        $region86: #{tpu_custom_call.1} parent=79 // pred_check_branch
          %560 = sbr.rel (%p558) target = $region88
        $region87: #{tpu_custom_call.1} parent=79 // pred_region
          %p561 = scmp.lt.s32.totalorder %s35, 1
          %s562 = scalar_select %p561, %s35, 1
          %p563 = scmp.lt.s32.totalorder %s36, 0
          %s564 = scalar_select %p563, %s36, 0
          %s565 = sadd.s32 %s564, %s562
          %s566 = smul.addr %s565, 8
          %s567 = scalar_lea.vmem %s1, %s566
        $region88: #{tpu_custom_call.1} parent=79 // pred_fallthru
          _
        // Predicated region
        $region89: #{tpu_custom_call.1} parent=79 // pred_check
          %p568 = pneg %p114
        $region90: #{tpu_custom_call.1} parent=79 // pred_check_branch
          %570 = sbr.rel (%p568) target = $region92
        $region91: #{tpu_custom_call.1} parent=79 // pred_region
          %p571 = scmp.lt.s32.totalorder %s35, 1
          %s572 = scalar_select %p571, %s35, 1
          %s573 = scalar_lea.vmem %s2, %s572
        $region92: #{tpu_custom_call.1} parent=79 // pred_fallthru
          _
      $region80: #{tpu_custom_call.1} parent=5 // pred_fallthru
        _
      %p574 = scmp.le.s32.totalorder 1, %s28
      %p575 = scmp.lt.s32.totalorder %s28, 3
      %p576 = pnand %p574, %p575
      %p577 = pneg %p576
      // Predicated region
      $region93: #{tpu_custom_call.1} parent=5 // pred_check
        _
      $region94: #{tpu_custom_call.1} parent=5 // pred_check_branch
        %579 = sbr.rel (%p576) target = $region96
      $region95: #{tpu_custom_call.1} parent=5 // pred_region
        %s580 = ssub.s32 %s28, 1
        %p581 = scmp.lt.s32.totalorder %s37, 1
        %s582 = scalar_select %p581, %s37, 1
        %s583 = smul.addr %s582, 8
        %s584 = scalar_lea.vmem %s0, %s583
        %p585 = pneg %p66
        %p586 = pneg %p63
        %p587 = scmp.lt.s32.totalorder %s37, 1
        %s588 = scalar_select %p587, %s37, 1
        %p589 = scmp.lt.s32.totalorder %s38, 0
        %s590 = scalar_select %p589, %s38, 0
        %s591 = sadd.s32 %s590, %s588
        %s592 = smul.addr %s591, 8
        %s593 = scalar_lea.vmem %s1, %s592
        %p594 = pneg %p94
        %p595 = pneg %p91
        %p596 = scmp.lt.s32.totalorder %s37, 1
        %s597 = scalar_select %p596, %s37, 1
        %s598 = scalar_lea.vmem %s2, %s597
        %p599 = pneg %p120
        %p600 = pneg %p117
        %p601 = pneg %p141
        %p602 = pneg %p138
        %p603 = pneg %p162
        %p604 = pneg %p159
        %p605 = pneg %p183
        %p606 = pneg %p180
        %p607 = pneg %p204
        %p608 = pneg %p201
        %p609 = pneg %p225
        %p610 = pneg %p222
        %p611 = pneg %p246
        %p612 = pneg %p243
        %p613 = pneg %p267
        %p614 = pneg %p264
        %p615 = pneg %p288
        %p616 = pneg %p285
        %p617 = pneg %p309
        %p618 = pneg %p306
        %p619 = pneg %p330
        %p620 = pneg %p327
        %p621 = pneg %p351
        %p622 = pneg %p348
        %p623 = pneg %p372
        %p624 = pneg %p369
        %p625 = pneg %p393
        %p626 = pneg %p390
        %p627 = pneg %p414
        %p628 = pneg %p411
        %p629 = pneg %p435
        %p630 = pneg %p432
        %p631 = pneg %p456
        %p632 = pneg %p453
        %p633 = pneg %p484
        %p634 = pneg %p481
        %s635 = sand.u32 %s471, 1
        %s636 = scalar_lea.sflag [#allocation3], %s635
        %s637 = sand.u32 %s471, 1
        %s638 = smul.addr %s637, 8
        %s639 = scalar_lea.vmem [#allocation2], %s638
        %p640 = scmp.lt.s32.totalorder %s37, 1
        %s641 = scalar_select %p640, %s37, 1
        %s642 = smul.addr %s641, 8
        %s643 = scalar_lea.vmem %s0, %s642
        %p644 = scmp.lt.s32.totalorder %s37, 1
        %s645 = scalar_select %p644, %s37, 1
        %p646 = scmp.lt.s32.totalorder %s38, 0
        %s647 = scalar_select %p646, %s38, 0
        %s648 = sadd.s32 %s647, %s645
        %s649 = smul.addr %s648, 8
        %s650 = scalar_lea.vmem %s1, %s649
        %p651 = scmp.lt.s32.totalorder %s37, 1
        %s652 = scalar_select %p651, %s37, 1
        %s653 = scalar_lea.vmem %s2, %s652
        %v655 = vld [vmem:[%s643] sm:$0xff]
        %v656 = vld [vmem:[%s650] sm:$0xff]
        %v657 = vld [vmem:[%s653] sm:$0x1]
        %v658 = vld [vmem:[%s15] sm:$0x1]
        %v659 = vld [vmem:[%s16] sm:$0x1]
        %vm660 = vcmask 261120
        %v661 = vsel %vm660, %v655, 0.0
        %662 = vadd.xlane.f32.xlu0 %v661
        %v663 = vpop.xlane.xlu0 %662
        %v664 = vrcp.pop 32.0
        %v665 = vmul.f32 %v663, %v664
        %v666 = vsub.f32 %v655, %v665
        %v667 = vmul.f32 %v666, %v666
        %v668 = vsel %vm660, %v667, 0.0
        %669 = vadd.xlane.f32.xlu0 %v668
        %v670 = vpop.xlane.xlu0 %669
        %v671 = vmul.f32 %v670, %v664
        %v673 = vlaneseq
        %v674 = vshrl.u32 %v673, 7
        %v675 = vsub.s32 0, %v674
        %v676 = vrot.slane %v658, %v675
        %v678 = vmul.f32 %v676, %v666
        %v679 = vadd.f32 %v671, 1e-06
        %v680 = vrsqrt.pop %v679
        %v681 = vmul.f32 %v678, %v680
        %v683 = vlaneseq
        %v684 = vshrl.u32 %v683, 7
        %v685 = vsub.s32 0, %v684
        %v686 = vrot.slane %v659, %v685
        %v688 = vadd.f32 %v681, %v686
        %v689 = vsel %vm660, %v656, 0.0
        %690 = vadd.xlane.f32.xlu0 %v689
        %v691 = vpop.xlane.xlu0 %690
        %v692 = vmul.f32 %v691, %v664
        %v693 = vsub.f32 %v656, %v692
        %v694 = vmul.f32 %v693, %v693
        %v695 = vsel %vm660, %v694, 0.0
        %696 = vadd.xlane.f32.xlu0 %v695
        %v697 = vpop.xlane.xlu0 %696
        %v698 = vmul.f32 %v697, %v664
        %v699 = vmul.f32 %v676, %v693
        %v700 = vadd.f32 %v698, 1e-06
        %v701 = vrsqrt.pop %v700
        %v702 = vmul.f32 %v699, %v701
        %v703 = vadd.f32 %v702, %v686
        %v704 = vpack.c.bf16 %v688, %v688
        %v705 = vpack.c.bf16 %v703, %v703
        %v706 = vld [vmem:[%s3] sm:$0xf]
        %v707 = vld [vmem:[%s3 + $0x4] sm:$0xf]
        %v708 = vld [vmem:[%s3 + $0x8] sm:$0xf]
        %v709 = vld [vmem:[%s3 + $0xc] sm:$0xf]
        %v710 = vld [vmem:[%s3 + $0x10] sm:$0xf]
        %v711 = vld [vmem:[%s3 + $0x14] sm:$0xf]
        %v712 = vld [vmem:[%s3 + $0x18] sm:$0xf]
        %v713 = vld [vmem:[%s3 + $0x1c] sm:$0xf]
        %v714 = vld [vmem:[%s3 + $0x20] sm:$0xf]
        %v715 = vld [vmem:[%s3 + $0x24] sm:$0xf]
        %v716 = vld [vmem:[%s3 + $0x28] sm:$0xf]
        %v717 = vld [vmem:[%s3 + $0x2c] sm:$0xf]
        %v718 = vld [vmem:[%s3 + $0x30] sm:$0xf]
        %v719 = vld [vmem:[%s3 + $0x34] sm:$0xf]
        %v720 = vld [vmem:[%s3 + $0x38] sm:$0xf]
        %v721 = vld [vmem:[%s3 + $0x3c] sm:$0xf]
        %v722 = vld [vmem:[%s4] sm:$0x1]
        %v723 = vld [vmem:[%s4 + $0x1] sm:$0x1]
        %v724 = vld [vmem:[%s4 + $0x2] sm:$0x1]
        %v725 = vld [vmem:[%s4 + $0x3] sm:$0x1]
        %v730 = vlaneseq
        %v731 = vshrl.u32 %v730, 7
        %v732 = vsub.s32 0, %v731
        %v733 = vrot.slane %v722, %v732
        %v734 = vlaneseq
        %v735 = vshrl.u32 %v734, 7
        %v736 = vsub.s32 0, %v735
        %v737 = vrot.slane %v723, %v736
        %v738 = vlaneseq
        %v739 = vshrl.u32 %v738, 7
        %v740 = vsub.s32 0, %v739
        %v741 = vrot.slane %v724, %v740
        %v742 = vlaneseq
        %v743 = vshrl.u32 %v742, 7
        %v744 = vsub.s32 0, %v743
        %v745 = vrot.slane %v725, %v744
        %v754 = vunpack.c.l.b16 %v706
        %v755 = vunpack.c.l.b16 %v707
        %v756 = vunpack.c.l.b16 %v708
        %v757 = vunpack.c.l.b16 %v709
        %v758 = vpack.c.b16 %v755, %v754
        %v759 = vpack.c.b16 %v757, %v756
        %v763 = vsel %vm660, %v705, 0
        %765 = vmatprep.subr.bf16.mxu0 0
        %766 = vmatpush1.bf16.msra.mxu0 %v758
        %767 = vmatprep.subr.bf16.mxu0 0
        %768 = vmatpush1.bf16.msra.mxu0 %v759
        %769 = vmatprep.subr.bf16.mxu0 0
        %770 = vmatpush1.bf16.msra.mxu0 0
        %771 = vmatprep.subr.bf16.mxu0 0
        %772 = vmatpush1.bf16.msra.mxu0 0
        %773 = vmatprep.subr.bf16.mxu0 0
        %774 = vmatpush1.bf16.msra.mxu0 0
        %775 = vmatprep.subr.bf16.mxu0 0
        %776 = vmatpush1.bf16.msra.mxu0 0
        %777 = vmatprep.subr.bf16.mxu0 0
        %778 = vmatpush1.bf16.msra.mxu0 0
        %779 = vmatprep.subr.bf16.mxu0 0
        %780 = vmatpush1.bf16.msra.mxu0 0
        %781 = vmatprep.subr.bf16.mxu0 0
        %782 = vmatpush1.bf16.msra.mxu0 0
        %783 = vmatprep.subr.bf16.mxu0 0
        %784 = vmatpush1.bf16.msra.mxu0 0
        %785 = vmatprep.subr.bf16.mxu0 0
        %786 = vmatpush1.bf16.msra.mxu0 0
        %787 = vmatprep.subr.bf16.mxu0 0
        %788 = vmatpush1.bf16.msra.mxu0 0
        %789 = vmatprep.subr.bf16.mxu0 0
        %790 = vmatpush1.bf16.msra.mxu0 0
        %791 = vmatprep.subr.bf16.mxu0 0
        %792 = vmatpush1.bf16.msra.mxu0 0
        %793 = vmatprep.subr.bf16.mxu0 0
        %794 = vmatpush1.bf16.msra.mxu0 0
        %795 = vmatprep.subr.bf16.mxu0 0
        %796 = vmatpush1.bf16.msra.mxu0 0
        %797 = vmatprep.mubr.bf16.mxu0 0
        %798 = vmatmul.mubr.bf16.gmra.mrb[0].mxu0 %v763
        %v799 = vpop.f32.mrb[0].mxu0
        %v800 = vadd.f32 %v733, %v799
        %v801 = vpop.f32.mrb[0].mxu0
        %v802 = vpop.f32.mrb[0].mxu0
        %v803 = vpop.f32.mrb[0].mxu0
        %804 = vdwg.mxu0
        %v809 = vunpack.c.l.b16 %v710
        %v810 = vunpack.c.l.b16 %v711
        %v811 = vunpack.c.l.b16 %v712
        %v812 = vunpack.c.l.b16 %v713
        %v813 = vpack.c.b16 %v810, %v809
        %v814 = vpack.c.b16 %v812, %v811
        %817 = vmatprep.subr.bf16.mxu0 0
        %818 = vmatpush1.bf16.msra.mxu0 %v813
        %819 = vmatprep.subr.bf16.mxu0 0
        %820 = vmatpush1.bf16.msra.mxu0 %v814
        %821 = vmatprep.subr.bf16.mxu0 0
        %822 = vmatpush1.bf16.msra.mxu0 0
        %823 = vmatprep.subr.bf16.mxu0 0
        %824 = vmatpush1.bf16.msra.mxu0 0
        %825 = vmatprep.subr.bf16.mxu0 0
        %826 = vmatpush1.bf16.msra.mxu0 0
        %827 = vmatprep.subr.bf16.mxu0 0
        %828 = vmatpush1.bf16.msra.mxu0 0
        %829 = vmatprep.subr.bf16.mxu0 0
        %830 = vmatpush1.bf16.msra.mxu0 0
        %831 = vmatprep.subr.bf16.mxu0 0
        %832 = vmatpush1.bf16.msra.mxu0 0
        %833 = vmatprep.subr.bf16.mxu0 0
        %834 = vmatpush1.bf16.msra.mxu0 0
        %835 = vmatprep.subr.bf16.mxu0 0
        %836 = vmatpush1.bf16.msra.mxu0 0
        %837 = vmatprep.subr.bf16.mxu0 0
        %838 = vmatpush1.bf16.msra.mxu0 0
        %839 = vmatprep.subr.bf16.mxu0 0
        %840 = vmatpush1.bf16.msra.mxu0 0
        %841 = vmatprep.subr.bf16.mxu0 0
        %842 = vmatpush1.bf16.msra.mxu0 0
        %843 = vmatprep.subr.bf16.mxu0 0
        %844 = vmatpush1.bf16.msra.mxu0 0
        %845 = vmatprep.subr.bf16.mxu0 0
        %846 = vmatpush1.bf16.msra.mxu0 0
        %847 = vmatprep.subr.bf16.mxu0 0
        %848 = vmatpush1.bf16.msra.mxu0 0
        %849 = vmatprep.mubr.bf16.mxu0 0
        %850 = vmatmul.mubr.bf16.gmra.mrb[0].mxu0 %v763
        %v851 = vpop.f32.mrb[0].mxu0
        %v852 = vadd.f32 %v737, %v851
        %v853 = vpop.f32.mrb[0].mxu0
        %v854 = vpop.f32.mrb[0].mxu0
        %v855 = vpop.f32.mrb[0].mxu0
        %856 = vdwg.mxu0
        %v861 = vunpack.c.l.b16 %v714
        %v862 = vunpack.c.l.b16 %v715
        %v863 = vunpack.c.l.b16 %v716
        %v864 = vunpack.c.l.b16 %v717
        %v865 = vpack.c.b16 %v862, %v861
        %v866 = vpack.c.b16 %v864, %v863
        %869 = vmatprep.subr.bf16.mxu0 0
        %870 = vmatpush1.bf16.msra.mxu0 %v865
        %871 = vmatprep.subr.bf16.mxu0 0
        %872 = vmatpush1.bf16.msra.mxu0 %v866
        %873 = vmatprep.subr.bf16.mxu0 0
        %874 = vmatpush1.bf16.msra.mxu0 0
        %875 = vmatprep.subr.bf16.mxu0 0
        %876 = vmatpush1.bf16.msra.mxu0 0
        %877 = vmatprep.subr.bf16.mxu0 0
        %878 = vmatpush1.bf16.msra.mxu0 0
        %879 = vmatprep.subr.bf16.mxu0 0
        %880 = vmatpush1.bf16.msra.mxu0 0
        %881 = vmatprep.subr.bf16.mxu0 0
        %882 = vmatpush1.bf16.msra.mxu0 0
        %883 = vmatprep.subr.bf16.mxu0 0
        %884 = vmatpush1.bf16.msra.mxu0 0
        %885 = vmatprep.subr.bf16.mxu0 0
        %886 = vmatpush1.bf16.msra.mxu0 0
        %887 = vmatprep.subr.bf16.mxu0 0
        %888 = vmatpush1.bf16.msra.mxu0 0
        %889 = vmatprep.subr.bf16.mxu0 0
        %890 = vmatpush1.bf16.msra.mxu0 0
        %891 = vmatprep.subr.bf16.mxu0 0
        %892 = vmatpush1.bf16.msra.mxu0 0
        %893 = vmatprep.subr.bf16.mxu0 0
        %894 = vmatpush1.bf16.msra.mxu0 0
        %895 = vmatprep.subr.bf16.mxu0 0
        %896 = vmatpush1.bf16.msra.mxu0 0
        %897 = vmatprep.subr.bf16.mxu0 0
        %898 = vmatpush1.bf16.msra.mxu0 0
        %899 = vmatprep.subr.bf16.mxu0 0
        %900 = vmatpush1.bf16.msra.mxu0 0
        %901 = vmatprep.mubr.bf16.mxu0 0
        %902 = vmatmul.mubr.bf16.gmra.mrb[0].mxu0 %v763
        %v903 = vpop.f32.mrb[0].mxu0
        %v904 = vadd.f32 %v741, %v903
        %v905 = vpop.f32.mrb[0].mxu0
        %v906 = vpop.f32.mrb[0].mxu0
        %v907 = vpop.f32.mrb[0].mxu0
        %908 = vdwg.mxu0
        %v913 = vunpack.c.l.b16 %v718
        %v914 = vunpack.c.l.b16 %v719
        %v915 = vunpack.c.l.b16 %v720
        %v916 = vunpack.c.l.b16 %v721
        %v917 = vpack.c.b16 %v914, %v913
        %v918 = vpack.c.b16 %v916, %v915
        %921 = vmatprep.subr.bf16.mxu0 0
        %922 = vmatpush1.bf16.msra.mxu0 %v917
        %923 = vmatprep.subr.bf16.mxu0 0
        %924 = vmatpush1.bf16.msra.mxu0 %v918
        %925 = vmatprep.subr.bf16.mxu0 0
        %926 = vmatpush1.bf16.msra.mxu0 0
        %927 = vmatprep.subr.bf16.mxu0 0
        %928 = vmatpush1.bf16.msra.mxu0 0
        %929 = vmatprep.subr.bf16.mxu0 0
        %930 = vmatpush1.bf16.msra.mxu0 0
        %931 = vmatprep.subr.bf16.mxu0 0
        %932 = vmatpush1.bf16.msra.mxu0 0
        %933 = vmatprep.subr.bf16.mxu0 0
        %934 = vmatpush1.bf16.msra.mxu0 0
        %935 = vmatprep.subr.bf16.mxu0 0
        %936 = vmatpush1.bf16.msra.mxu0 0
        %937 = vmatprep.subr.bf16.mxu0 0
        %938 = vmatpush1.bf16.msra.mxu0 0
        %939 = vmatprep.subr.bf16.mxu0 0
        %940 = vmatpush1.bf16.msra.mxu0 0
        %941 = vmatprep.subr.bf16.mxu0 0
        %942 = vmatpush1.bf16.msra.mxu0 0
        %943 = vmatprep.subr.bf16.mxu0 0
        %944 = vmatpush1.bf16.msra.mxu0 0
        %945 = vmatprep.subr.bf16.mxu0 0
        %946 = vmatpush1.bf16.msra.mxu0 0
        %947 = vmatprep.subr.bf16.mxu0 0
        %948 = vmatpush1.bf16.msra.mxu0 0
        %949 = vmatprep.subr.bf16.mxu0 0
        %950 = vmatpush1.bf16.msra.mxu0 0
        %951 = vmatprep.subr.bf16.mxu0 0
        %952 = vmatpush1.bf16.msra.mxu0 0
        %953 = vmatprep.mubr.bf16.mxu0 0
        %954 = vmatmul.mubr.bf16.gmra.mrb[0].mxu0 %v763
        %v955 = vpop.f32.mrb[0].mxu0
        %v956 = vadd.f32 %v745, %v955
        %v957 = vpop.f32.mrb[0].mxu0
        %v958 = vpop.f32.mrb[0].mxu0
        %v959 = vpop.f32.mrb[0].mxu0
        %960 = vdwg.mxu0
        %v961 = vld [vmem:[%s5] sm:$0xf]
        %v962 = vld [vmem:[%s5 + $0x4] sm:$0xf]
        %v963 = vld [vmem:[%s5 + $0x8] sm:$0xf]
        %v964 = vld [vmem:[%s5 + $0xc] sm:$0xf]
        %v965 = vld [vmem:[%s5 + $0x10] sm:$0xf]
        %v966 = vld [vmem:[%s5 + $0x14] sm:$0xf]
        %v967 = vld [vmem:[%s5 + $0x18] sm:$0xf]
        %v968 = vld [vmem:[%s5 + $0x1c] sm:$0xf]
        %v969 = vld [vmem:[%s5 + $0x20] sm:$0xf]
        %v970 = vld [vmem:[%s5 + $0x24] sm:$0xf]
        %v971 = vld [vmem:[%s5 + $0x28] sm:$0xf]
        %v972 = vld [vmem:[%s5 + $0x2c] sm:$0xf]
        %v973 = vld [vmem:[%s5 + $0x30] sm:$0xf]
        %v974 = vld [vmem:[%s5 + $0x34] sm:$0xf]
        %v975 = vld [vmem:[%s5 + $0x38] sm:$0xf]
        %v976 = vld [vmem:[%s5 + $0x3c] sm:$0xf]
        %v977 = vld [vmem:[%s6] sm:$0x1]
        %v978 = vld [vmem:[%s6 + $0x1] sm:$0x1]
        %v979 = vld [vmem:[%s6 + $0x2] sm:$0x1]
        %v980 = vld [vmem:[%s6 + $0x3] sm:$0x1]
        %v985 = vlaneseq
        %v986 = vshrl.u32 %v985, 7
        %v987 = vsub.s32 0, %v986
        %v988 = vrot.slane %v977, %v987
        %v989 = vlaneseq
        %v990 = vshrl.u32 %v989, 7
        %v991 = vsub.s32 0, %v990
        %v992 = vrot.slane %v978, %v991
        %v993 = vlaneseq
        %v994 = vshrl.u32 %v993, 7
        %v995 = vsub.s32 0, %v994
        %v996 = vrot.slane %v979, %v995
        %v997 = vlaneseq
        %v998 = vshrl.u32 %v997, 7
        %v999 = vsub.s32 0, %v998
        %v1000 = vrot.slane %v980, %v999
        %v1009 = vunpack.c.l.b16 %v961
        %v1010 = vunpack.c.l.b16 %v962
        %v1011 = vunpack.c.l.b16 %v963
        %v1012 = vunpack.c.l.b16 %v964
        %v1013 = vpack.c.b16 %v1010, %v1009
        %v1014 = vpack.c.b16 %v1012, %v1011
        %v1018 = vsel %vm660, %v704, 0
        %1020 = vmatprep.subr.bf16.mxu0 0
        %1021 = vmatpush1.bf16.msra.mxu0 %v1013
        %1022 = vmatprep.subr.bf16.mxu0 0
        %1023 = vmatpush1.bf16.msra.mxu0 %v1014
        %1024 = vmatprep.subr.bf16.mxu0 0
        %1025 = vmatpush1.bf16.msra.mxu0 0
        %1026 = vmatprep.subr.bf16.mxu0 0
        %1027 = vmatpush1.bf16.msra.mxu0 0
        %1028 = vmatprep.subr.bf16.mxu0 0
        %1029 = vmatpush1.bf16.msra.mxu0 0
        %1030 = vmatprep.subr.bf16.mxu0 0
        %1031 = vmatpush1.bf16.msra.mxu0 0
        %1032 = vmatprep.subr.bf16.mxu0 0
        %1033 = vmatpush1.bf16.msra.mxu0 0
        %1034 = vmatprep.subr.bf16.mxu0 0
        %1035 = vmatpush1.bf16.msra.mxu0 0
        %1036 = vmatprep.subr.bf16.mxu0 0
        %1037 = vmatpush1.bf16.msra.mxu0 0
        %1038 = vmatprep.subr.bf16.mxu0 0
        %1039 = vmatpush1.bf16.msra.mxu0 0
        %1040 = vmatprep.subr.bf16.mxu0 0
        %1041 = vmatpush1.bf16.msra.mxu0 0
        %1042 = vmatprep.subr.bf16.mxu0 0
        %1043 = vmatpush1.bf16.msra.mxu0 0
        %1044 = vmatprep.subr.bf16.mxu0 0
        %1045 = vmatpush1.bf16.msra.mxu0 0
        %1046 = vmatprep.subr.bf16.mxu0 0
        %1047 = vmatpush1.bf16.msra.mxu0 0
        %1048 = vmatprep.subr.bf16.mxu0 0
        %1049 = vmatpush1.bf16.msra.mxu0 0
        %1050 = vmatprep.subr.bf16.mxu0 0
        %1051 = vmatpush1.bf16.msra.mxu0 0
        %1052 = vmatprep.mubr.bf16.mxu0 0
        %1053 = vmatmul.mubr.bf16.gmra.mrb[0].mxu0 %v1018
        %v1054 = vpop.f32.mrb[0].mxu0
        %v1055 = vadd.f32 %v988, %v1054
        %v1056 = vpop.f32.mrb[0].mxu0
        %v1057 = vpop.f32.mrb[0].mxu0
        %v1058 = vpop.f32.mrb[0].mxu0
        %1059 = vdwg.mxu0
        %v1064 = vunpack.c.l.b16 %v965
        %v1065 = vunpack.c.l.b16 %v966
        %v1066 = vunpack.c.l.b16 %v967
        %v1067 = vunpack.c.l.b16 %v968
        %v1068 = vpack.c.b16 %v1065, %v1064
        %v1069 = vpack.c.b16 %v1067, %v1066
        %1072 = vmatprep.subr.bf16.mxu0 0
        %1073 = vmatpush1.bf16.msra.mxu0 %v1068
        %1074 = vmatprep.subr.bf16.mxu0 0
        %1075 = vmatpush1.bf16.msra.mxu0 %v1069
        %1076 = vmatprep.subr.bf16.mxu0 0
        %1077 = vmatpush1.bf16.msra.mxu0 0
        %1078 = vmatprep.subr.bf16.mxu0 0
        %1079 = vmatpush1.bf16.msra.mxu0 0
        %1080 = vmatprep.subr.bf16.mxu0 0
        %1081 = vmatpush1.bf16.msra.mxu0 0
        %1082 = vmatprep.subr.bf16.mxu0 0
        %1083 = vmatpush1.bf16.msra.mxu0 0
        %1084 = vmatprep.subr.bf16.mxu0 0
        %1085 = vmatpush1.bf16.msra.mxu0 0
        %1086 = vmatprep.subr.bf16.mxu0 0
        %1087 = vmatpush1.bf16.msra.mxu0 0
        %1088 = vmatprep.subr.bf16.mxu0 0
        %1089 = vmatpush1.bf16.msra.mxu0 0
        %1090 = vmatprep.subr.bf16.mxu0 0
        %1091 = vmatpush1.bf16.msra.mxu0 0
        %1092 = vmatprep.subr.bf16.mxu0 0
        %1093 = vmatpush1.bf16.msra.mxu0 0
        %1094 = vmatprep.subr.bf16.mxu0 0
        %1095 = vmatpush1.bf16.msra.mxu0 0
        %1096 = vmatprep.subr.bf16.mxu0 0
        %1097 = vmatpush1.bf16.msra.mxu0 0
        %1098 = vmatprep.subr.bf16.mxu0 0
        %1099 = vmatpush1.bf16.msra.mxu0 0
        %1100 = vmatprep.subr.bf16.mxu0 0
        %1101 = vmatpush1.bf16.msra.mxu0 0
        %1102 = vmatprep.subr.bf16.mxu0 0
        %1103 = vmatpush1.bf16.msra.mxu0 0
        %1104 = vmatprep.mubr.bf16.mxu0 0
        %1105 = vmatmul.mubr.bf16.gmra.mrb[0].mxu0 %v1018
        %v1106 = vpop.f32.mrb[0].mxu0
        %v1107 = vadd.f32 %v992, %v1106
        %v1108 = vpop.f32.mrb[0].mxu0
        %v1109 = vpop.f32.mrb[0].mxu0
        %v1110 = vpop.f32.mrb[0].mxu0
        %1111 = vdwg.mxu0
        %v1116 = vunpack.c.l.b16 %v969
        %v1117 = vunpack.c.l.b16 %v970
        %v1118 = vunpack.c.l.b16 %v971
        %v1119 = vunpack.c.l.b16 %v972
        %v1120 = vpack.c.b16 %v1117, %v1116
        %v1121 = vpack.c.b16 %v1119, %v1118
        %1124 = vmatprep.subr.bf16.mxu0 0
        %1125 = vmatpush1.bf16.msra.mxu0 %v1120
        %1126 = vmatprep.subr.bf16.mxu0 0
        %1127 = vmatpush1.bf16.msra.mxu0 %v1121
        %1128 = vmatprep.subr.bf16.mxu0 0
        %1129 = vmatpush1.bf16.msra.mxu0 0
        %1130 = vmatprep.subr.bf16.mxu0 0
        %1131 = vmatpush1.bf16.msra.mxu0 0
        %1132 = vmatprep.subr.bf16.mxu0 0
        %1133 = vmatpush1.bf16.msra.mxu0 0
        %1134 = vmatprep.subr.bf16.mxu0 0
        %1135 = vmatpush1.bf16.msra.mxu0 0
        %1136 = vmatprep.subr.bf16.mxu0 0
        %1137 = vmatpush1.bf16.msra.mxu0 0
        %1138 = vmatprep.subr.bf16.mxu0 0
        %1139 = vmatpush1.bf16.msra.mxu0 0
        %1140 = vmatprep.subr.bf16.mxu0 0
        %1141 = vmatpush1.bf16.msra.mxu0 0
        %1142 = vmatprep.subr.bf16.mxu0 0
        %1143 = vmatpush1.bf16.msra.mxu0 0
        %1144 = vmatprep.subr.bf16.mxu0 0
        %1145 = vmatpush1.bf16.msra.mxu0 0
        %1146 = vmatprep.subr.bf16.mxu0 0
        %1147 = vmatpush1.bf16.msra.mxu0 0
        %1148 = vmatprep.subr.bf16.mxu0 0
        %1149 = vmatpush1.bf16.msra.mxu0 0
        %1150 = vmatprep.subr.bf16.mxu0 0
        %1151 = vmatpush1.bf16.msra.mxu0 0
        %1152 = vmatprep.subr.bf16.mxu0 0
        %1153 = vmatpush1.bf16.msra.mxu0 0
        %1154 = vmatprep.subr.bf16.mxu0 0
        %1155 = vmatpush1.bf16.msra.mxu0 0
        %1156 = vmatprep.mubr.bf16.mxu0 0
        %1157 = vmatmul.mubr.bf16.gmra.mrb[0].mxu0 %v1018
        %v1158 = vpop.f32.mrb[0].mxu0
        %v1159 = vadd.f32 %v996, %v1158
        %v1160 = vpop.f32.mrb[0].mxu0
        %v1161 = vpop.f32.mrb[0].mxu0
        %v1162 = vpop.f32.mrb[0].mxu0
        %1163 = vdwg.mxu0
        %v1168 = vunpack.c.l.b16 %v973
        %v1169 = vunpack.c.l.b16 %v974
        %v1170 = vunpack.c.l.b16 %v975
        %v1171 = vunpack.c.l.b16 %v976
        %v1172 = vpack.c.b16 %v1169, %v1168
        %v1173 = vpack.c.b16 %v1171, %v1170
        %1176 = vmatprep.subr.bf16.mxu0 0
        %1177 = vmatpush1.bf16.msra.mxu0 %v1172
        %1178 = vmatprep.subr.bf16.mxu0 0
        %1179 = vmatpush1.bf16.msra.mxu0 %v1173
        %1180 = vmatprep.subr.bf16.mxu0 0
        %1181 = vmatpush1.bf16.msra.mxu0 0
        %1182 = vmatprep.subr.bf16.mxu0 0
        %1183 = vmatpush1.bf16.msra.mxu0 0
        %1184 = vmatprep.subr.bf16.mxu0 0
        %1185 = vmatpush1.bf16.msra.mxu0 0
        %1186 = vmatprep.subr.bf16.mxu0 0
        %1187 = vmatpush1.bf16.msra.mxu0 0
        %1188 = vmatprep.subr.bf16.mxu0 0
        %1189 = vmatpush1.bf16.msra.mxu0 0
        %1190 = vmatprep.subr.bf16.mxu0 0
        %1191 = vmatpush1.bf16.msra.mxu0 0
        %1192 = vmatprep.subr.bf16.mxu0 0
        %1193 = vmatpush1.bf16.msra.mxu0 0
        %1194 = vmatprep.subr.bf16.mxu0 0
        %1195 = vmatpush1.bf16.msra.mxu0 0
        %1196 = vmatprep.subr.bf16.mxu0 0
        %1197 = vmatpush1.bf16.msra.mxu0 0
        %1198 = vmatprep.subr.bf16.mxu0 0
        %1199 = vmatpush1.bf16.msra.mxu0 0
        %1200 = vmatprep.subr.bf16.mxu0 0
        %1201 = vmatpush1.bf16.msra.mxu0 0
        %1202 = vmatprep.subr.bf16.mxu0 0
        %1203 = vmatpush1.bf16.msra.mxu0 0
        %1204 = vmatprep.subr.bf16.mxu0 0
        %1205 = vmatpush1.bf16.msra.mxu0 0
        %1206 = vmatprep.subr.bf16.mxu0 0
        %1207 = vmatpush1.bf16.msra.mxu0 0
        %1208 = vmatprep.mubr.bf16.mxu0 0
        %1209 = vmatmul.mubr.bf16.gmra.mrb[0].mxu0 %v1018
        %v1210 = vpop.f32.mrb[0].mxu0
        %v1211 = vadd.f32 %v1000, %v1210
        %v1212 = vpop.f32.mrb[0].mxu0
        %v1213 = vpop.f32.mrb[0].mxu0
        %v1214 = vpop.f32.mrb[0].mxu0
        %1215 = vdwg.mxu0
        %v1216 = vld [vmem:[%s7] sm:$0xf]
        %v1217 = vld [vmem:[%s7 + $0x4] sm:$0xf]
        %v1218 = vld [vmem:[%s7 + $0x8] sm:$0xf]
        %v1219 = vld [vmem:[%s7 + $0xc] sm:$0xf]
        %v1220 = vld [vmem:[%s7 + $0x10] sm:$0xf]
        %v1221 = vld [vmem:[%s7 + $0x14] sm:$0xf]
        %v1222 = vld [vmem:[%s7 + $0x18] sm:$0xf]
        %v1223 = vld [vmem:[%s7 + $0x1c] sm:$0xf]
        %v1224 = vld [vmem:[%s7 + $0x20] sm:$0xf]
        %v1225 = vld [vmem:[%s7 + $0x24] sm:$0xf]
        %v1226 = vld [vmem:[%s7 + $0x28] sm:$0xf]
        %v1227 = vld [vmem:[%s7 + $0x2c] sm:$0xf]
        %v1228 = vld [vmem:[%s7 + $0x30] sm:$0xf]
        %v1229 = vld [vmem:[%s7 + $0x34] sm:$0xf]
        %v1230 = vld [vmem:[%s7 + $0x38] sm:$0xf]
        %v1231 = vld [vmem:[%s7 + $0x3c] sm:$0xf]
        %v1232 = vld [vmem:[%s8] sm:$0x1]
        %v1233 = vld [vmem:[%s8 + $0x1] sm:$0x1]
        %v1234 = vld [vmem:[%s8 + $0x2] sm:$0x1]
        %v1235 = vld [vmem:[%s8 + $0x3] sm:$0x1]
        %v1240 = vlaneseq
        %v1241 = vshrl.u32 %v1240, 7
        %v1242 = vsub.s32 0, %v1241
        %v1243 = vrot.slane %v1232, %v1242
        %v1244 = vlaneseq
        %v1245 = vshrl.u32 %v1244, 7
        %v1246 = vsub.s32 0, %v1245
        %v1247 = vrot.slane %v1233, %v1246
        %v1248 = vlaneseq
        %v1249 = vshrl.u32 %v1248, 7
        %v1250 = vsub.s32 0, %v1249
        %v1251 = vrot.slane %v1234, %v1250
        %v1252 = vlaneseq
        %v1253 = vshrl.u32 %v1252, 7
        %v1254 = vsub.s32 0, %v1253
        %v1255 = vrot.slane %v1235, %v1254
        %v1264 = vunpack.c.l.b16 %v1216
        %v1265 = vunpack.c.l.b16 %v1217
        %v1266 = vunpack.c.l.b16 %v1218
        %v1267 = vunpack.c.l.b16 %v1219
        %v1268 = vpack.c.b16 %v1265, %v1264
        %v1269 = vpack.c.b16 %v1267, %v1266
        %1272 = vmatprep.subr.bf16.mxu0 0
        %1273 = vmatpush1.bf16.msra.mxu0 %v1268
        %1274 = vmatprep.subr.bf16.mxu0 0
        %1275 = vmatpush1.bf16.msra.mxu0 %v1269
        %1276 = vmatprep.subr.bf16.mxu0 0
        %1277 = vmatpush1.bf16.msra.mxu0 0
        %1278 = vmatprep.subr.bf16.mxu0 0
        %1279 = vmatpush1.bf16.msra.mxu0 0
        %1280 = vmatprep.subr.bf16.mxu0 0
        %1281 = vmatpush1.bf16.msra.mxu0 0
        %1282 = vmatprep.subr.bf16.mxu0 0
        %1283 = vmatpush1.bf16.msra.mxu0 0
        %1284 = vmatprep.subr.bf16.mxu0 0
        %1285 = vmatpush1.bf16.msra.mxu0 0
        %1286 = vmatprep.subr.bf16.mxu0 0
        %1287 = vmatpush1.bf16.msra.mxu0 0
        %1288 = vmatprep.subr.bf16.mxu0 0
        %1289 = vmatpush1.bf16.msra.mxu0 0
        %1290 = vmatprep.subr.bf16.mxu0 0
        %1291 = vmatpush1.bf16.msra.mxu0 0
        %1292 = vmatprep.subr.bf16.mxu0 0
        %1293 = vmatpush1.bf16.msra.mxu0 0
        %1294 = vmatprep.subr.bf16.mxu0 0
        %1295 = vmatpush1.bf16.msra.mxu0 0
        %1296 = vmatprep.subr.bf16.mxu0 0
        %1297 = vmatpush1.bf16.msra.mxu0 0
        %1298 = vmatprep.subr.bf16.mxu0 0
        %1299 = vmatpush1.bf16.msra.mxu0 0
        %1300 = vmatprep.subr.bf16.mxu0 0
        %1301 = vmatpush1.bf16.msra.mxu0 0
        %1302 = vmatprep.subr.bf16.mxu0 0
        %1303 = vmatpush1.bf16.msra.mxu0 0
        %1304 = vmatprep.mubr.bf16.mxu0 0
        %1305 = vmatmul.mubr.bf16.gmra.mrb[0].mxu0 %v1018
        %v1306 = vpop.f32.mrb[0].mxu0
        %v1307 = vadd.f32 %v1243, %v1306
        %v1308 = vpop.f32.mrb[0].mxu0
        %v1309 = vpop.f32.mrb[0].mxu0
        %v1310 = vpop.f32.mrb[0].mxu0
        %1311 = vdwg.mxu0
        %v1316 = vunpack.c.l.b16 %v1220
        %v1317 = vunpack.c.l.b16 %v1221
        %v1318 = vunpack.c.l.b16 %v1222
        %v1319 = vunpack.c.l.b16 %v1223
        %v1320 = vpack.c.b16 %v1317, %v1316
        %v1321 = vpack.c.b16 %v1319, %v1318
        %1324 = vmatprep.subr.bf16.mxu0 0
        %1325 = vmatpush1.bf16.msra.mxu0 %v1320
        %1326 = vmatprep.subr.bf16.mxu0 0
        %1327 = vmatpush1.bf16.msra.mxu0 %v1321
        %1328 = vmatprep.subr.bf16.mxu0 0
        %1329 = vmatpush1.bf16.msra.mxu0 0
        %1330 = vmatprep.subr.bf16.mxu0 0
        %1331 = vmatpush1.bf16.msra.mxu0 0
        %1332 = vmatprep.subr.bf16.mxu0 0
        %1333 = vmatpush1.bf16.msra.mxu0 0
        %1334 = vmatprep.subr.bf16.mxu0 0
        %1335 = vmatpush1.bf16.msra.mxu0 0
        %1336 = vmatprep.subr.bf16.mxu0 0
        %1337 = vmatpush1.bf16.msra.mxu0 0
        %1338 = vmatprep.subr.bf16.mxu0 0
        %1339 = vmatpush1.bf16.msra.mxu0 0
        %1340 = vmatprep.subr.bf16.mxu0 0
        %1341 = vmatpush1.bf16.msra.mxu0 0
        %1342 = vmatprep.subr.bf16.mxu0 0
        %1343 = vmatpush1.bf16.msra.mxu0 0
        %1344 = vmatprep.subr.bf16.mxu0 0
        %1345 = vmatpush1.bf16.msra.mxu0 0
        %1346 = vmatprep.subr.bf16.mxu0 0
        %1347 = vmatpush1.bf16.msra.mxu0 0
        %1348 = vmatprep.subr.bf16.mxu0 0
        %1349 = vmatpush1.bf16.msra.mxu0 0
        %1350 = vmatprep.subr.bf16.mxu0 0
        %1351 = vmatpush1.bf16.msra.mxu0 0
        %1352 = vmatprep.subr.bf16.mxu0 0
        %1353 = vmatpush1.bf16.msra.mxu0 0
        %1354 = vmatprep.subr.bf16.mxu0 0
        %1355 = vmatpush1.bf16.msra.mxu0 0
        %1356 = vmatprep.mubr.bf16.mxu0 0
        %1357 = vmatmul.mubr.bf16.gmra.mrb[0].mxu0 %v1018
        %v1358 = vpop.f32.mrb[0].mxu0
        %v1359 = vadd.f32 %v1247, %v1358
        %v1360 = vpop.f32.mrb[0].mxu0
        %v1361 = vpop.f32.mrb[0].mxu0
        %v1362 = vpop.f32.mrb[0].mxu0
        %1363 = vdwg.mxu0
        %v1368 = vunpack.c.l.b16 %v1224
        %v1369 = vunpack.c.l.b16 %v1225
        %v1370 = vunpack.c.l.b16 %v1226
        %v1371 = vunpack.c.l.b16 %v1227
        %v1372 = vpack.c.b16 %v1369, %v1368
        %v1373 = vpack.c.b16 %v1371, %v1370
        %1376 = vmatprep.subr.bf16.mxu0 0
        %1377 = vmatpush1.bf16.msra.mxu0 %v1372
        %1378 = vmatprep.subr.bf16.mxu0 0
        %1379 = vmatpush1.bf16.msra.mxu0 %v1373
        %1380 = vmatprep.subr.bf16.mxu0 0
        %1381 = vmatpush1.bf16.msra.mxu0 0
        %1382 = vmatprep.subr.bf16.mxu0 0
        %1383 = vmatpush1.bf16.msra.mxu0 0
        %1384 = vmatprep.subr.bf16.mxu0 0
        %1385 = vmatpush1.bf16.msra.mxu0 0
        %1386 = vmatprep.subr.bf16.mxu0 0
        %1387 = vmatpush1.bf16.msra.mxu0 0
        %1388 = vmatprep.subr.bf16.mxu0 0
        %1389 = vmatpush1.bf16.msra.mxu0 0
        %1390 = vmatprep.subr.bf16.mxu0 0
        %1391 = vmatpush1.bf16.msra.mxu0 0
        %1392 = vmatprep.subr.bf16.mxu0 0
        %1393 = vmatpush1.bf16.msra.mxu0 0
        %1394 = vmatprep.subr.bf16.mxu0 0
        %1395 = vmatpush1.bf16.msra.mxu0 0
        %1396 = vmatprep.subr.bf16.mxu0 0
        %1397 = vmatpush1.bf16.msra.mxu0 0
        %1398 = vmatprep.subr.bf16.mxu0 0
        %1399 = vmatpush1.bf16.msra.mxu0 0
        %1400 = vmatprep.subr.bf16.mxu0 0
        %1401 = vmatpush1.bf16.msra.mxu0 0
        %1402 = vmatprep.subr.bf16.mxu0 0
        %1403 = vmatpush1.bf16.msra.mxu0 0
        %1404 = vmatprep.subr.bf16.mxu0 0
        %1405 = vmatpush1.bf16.msra.mxu0 0
        %1406 = vmatprep.subr.bf16.mxu0 0
        %1407 = vmatpush1.bf16.msra.mxu0 0
        %1408 = vmatprep.mubr.bf16.mxu0 0
        %1409 = vmatmul.mubr.bf16.gmra.mrb[0].mxu0 %v1018
        %v1410 = vpop.f32.mrb[0].mxu0
        %v1411 = vadd.f32 %v1251, %v1410
        %v1412 = vpop.f32.mrb[0].mxu0
        %v1413 = vpop.f32.mrb[0].mxu0
        %v1414 = vpop.f32.mrb[0].mxu0
        %1415 = vdwg.mxu0
        %v1420 = vunpack.c.l.b16 %v1228
        %v1421 = vunpack.c.l.b16 %v1229
        %v1422 = vunpack.c.l.b16 %v1230
        %v1423 = vunpack.c.l.b16 %v1231
        %v1424 = vpack.c.b16 %v1421, %v1420
        %v1425 = vpack.c.b16 %v1423, %v1422
        %1428 = vmatprep.subr.bf16.mxu0 0
        %1429 = vmatpush1.bf16.msra.mxu0 %v1424
        %1430 = vmatprep.subr.bf16.mxu0 0
        %1431 = vmatpush1.bf16.msra.mxu0 %v1425
        %1432 = vmatprep.subr.bf16.mxu0 0
        %1433 = vmatpush1.bf16.msra.mxu0 0
        %1434 = vmatprep.subr.bf16.mxu0 0
        %1435 = vmatpush1.bf16.msra.mxu0 0
        %1436 = vmatprep.subr.bf16.mxu0 0
        %1437 = vmatpush1.bf16.msra.mxu0 0
        %1438 = vmatprep.subr.bf16.mxu0 0
        %1439 = vmatpush1.bf16.msra.mxu0 0
        %1440 = vmatprep.subr.bf16.mxu0 0
        %1441 = vmatpush1.bf16.msra.mxu0 0
        %1442 = vmatprep.subr.bf16.mxu0 0
        %1443 = vmatpush1.bf16.msra.mxu0 0
        %1444 = vmatprep.subr.bf16.mxu0 0
        %1445 = vmatpush1.bf16.msra.mxu0 0
        %1446 = vmatprep.subr.bf16.mxu0 0
        %1447 = vmatpush1.bf16.msra.mxu0 0
        %1448 = vmatprep.subr.bf16.mxu0 0
        %1449 = vmatpush1.bf16.msra.mxu0 0
        %1450 = vmatprep.subr.bf16.mxu0 0
        %1451 = vmatpush1.bf16.msra.mxu0 0
        %1452 = vmatprep.subr.bf16.mxu0 0
        %1453 = vmatpush1.bf16.msra.mxu0 0
        %1454 = vmatprep.subr.bf16.mxu0 0
        %1455 = vmatpush1.bf16.msra.mxu0 0
        %1456 = vmatprep.subr.bf16.mxu0 0
        %1457 = vmatpush1.bf16.msra.mxu0 0
        %1458 = vmatprep.subr.bf16.mxu0 0
        %1459 = vmatpush1.bf16.msra.mxu0 0
        %1460 = vmatprep.mubr.bf16.mxu0 0
        %1461 = vmatmul.mubr.bf16.gmra.mrb[0].mxu0 %v1018
        %v1462 = vpop.f32.mrb[0].mxu0
        %v1463 = vadd.f32 %v1255, %v1462
        %v1464 = vpop.f32.mrb[0].mxu0
        %v1465 = vpop.f32.mrb[0].mxu0
        %v1466 = vpop.f32.mrb[0].mxu0
        %1467 = vdwg.mxu0
        %v1468 = vpack.c.bf16 %v800, %v800
        %v1469 = vpack.c.bf16 %v852, %v852
        %v1470 = vpack.c.bf16 %v904, %v904
        %v1471 = vpack.c.bf16 %v956, %v956
        %v1472 = vpack.c.bf16 %v1055, %v1055
        %v1473 = vpack.c.bf16 %v1107, %v1107
        %v1474 = vpack.c.bf16 %v1159, %v1159
        %v1475 = vpack.c.bf16 %v1211, %v1211
        %v1477 = vlaneseq
        %v1478 = vshrl.u32 %v1477, 7
        %v1479 = vsub.s32 0, %v1478
        %v1480 = vrot.slane %v657, %v1479
        %vm1482 = vcmask 64512
        %v1484 = vsel %vm1482, %v1468, 0
        %v1487 = vsel %vm1482, %v1472, 0
        %1489 = vmatprep.subr.bf16.mxu0 0
        %1490 = vmatpush1.bf16.xpose.msra.mxu0 %v1487
        %1491 = vmatprep.subr.bf16.mxu0 0
        %1492 = vmatpush1.bf16.xpose.msra.mxu0 0
        %1493 = vmatprep.subr.bf16.mxu0 0
        %1494 = vmatpush1.bf16.xpose.msra.mxu0 0
        %1495 = vmatprep.subr.bf16.mxu0 0
        %1496 = vmatpush1.bf16.xpose.msra.mxu0 0
        %1497 = vmatprep.subr.bf16.mxu0 0
        %1498 = vmatpush1.bf16.xpose.msra.mxu0 0
        %1499 = vmatprep.subr.bf16.mxu0 0
        %1500 = vmatpush1.bf16.xpose.msra.mxu0 0
        %1501 = vmatprep.subr.bf16.mxu0 0
        %1502 = vmatpush1.bf16.xpose.msra.mxu0 0
        %1503 = vmatprep.subr.bf16.mxu0 0
        %1504 = vmatpush1.bf16.xpose.msra.mxu0 0
        %1505 = vmatprep.subr.bf16.mxu0 0
        %1506 = vmatpush1.bf16.xpose.msra.mxu0 0
        %1507 = vmatprep.subr.bf16.mxu0 0
        %1508 = vmatpush1.bf16.xpose.msra.mxu0 0
        %1509 = vmatprep.subr.bf16.mxu0 0
        %1510 = vmatpush1.bf16.xpose.msra.mxu0 0
        %1511 = vmatprep.subr.bf16.mxu0 0
        %1512 = vmatpush1.bf16.xpose.msra.mxu0 0
        %1513 = vmatprep.subr.bf16.mxu0 0
        %1514 = vmatpush1.bf16.xpose.msra.mxu0 0
        %1515 = vmatprep.subr.bf16.mxu0 0
        %1516 = vmatpush1.bf16.xpose.msra.mxu0 0
        %1517 = vmatprep.subr.bf16.mxu0 0
        %1518 = vmatpush1.bf16.xpose.msra.mxu0 0
        %1519 = vmatprep.subr.bf16.mxu0 0
        %1520 = vmatpush1.bf16.xpose.msra.mxu0 0
        %1521 = vmatprep.mubr.bf16.mxu0 0
        %1522 = vmatmul.mubr.bf16.gmra.mrb[0].mxu0 %v1484
        %v1523 = vpop.f32.mrb[0].mxu0
        %v1524 = vadd.f32 %v1480, %v1523
        %v1525 = vpop.f32.mrb[0].mxu0
        %v1526 = vpop.f32.mrb[0].mxu0
        %v1527 = vpop.f32.mrb[0].mxu0
        %1528 = vdwg.mxu0
        %v1530 = vsel %vm1482, %v1469, 0
        %v1533 = vsel %vm1482, %v1473, 0
        %1535 = vmatprep.subr.bf16.mxu0 0
        %1536 = vmatpush1.bf16.xpose.msra.mxu0 %v1533
        %1537 = vmatprep.subr.bf16.mxu0 0
        %1538 = vmatpush1.bf16.xpose.msra.mxu0 0
        %1539 = vmatprep.subr.bf16.mxu0 0
        %1540 = vmatpush1.bf16.xpose.msra.mxu0 0
        %1541 = vmatprep.subr.bf16.mxu0 0
        %1542 = vmatpush1.bf16.xpose.msra.mxu0 0
        %1543 = vmatprep.subr.bf16.mxu0 0
        %1544 = vmatpush1.bf16.xpose.msra.mxu0 0
        %1545 = vmatprep.subr.bf16.mxu0 0
        %1546 = vmatpush1.bf16.xpose.msra.mxu0 0
        %1547 = vmatprep.subr.bf16.mxu0 0
        %1548 = vmatpush1.bf16.xpose.msra.mxu0 0
        %1549 = vmatprep.subr.bf16.mxu0 0
        %1550 = vmatpush1.bf16.xpose.msra.mxu0 0
        %1551 = vmatprep.subr.bf16.mxu0 0
        %1552 = vmatpush1.bf16.xpose.msra.mxu0 0
        %1553 = vmatprep.subr.bf16.mxu0 0
        %1554 = vmatpush1.bf16.xpose.msra.mxu0 0
        %1555 = vmatprep.subr.bf16.mxu0 0
        %1556 = vmatpush1.bf16.xpose.msra.mxu0 0
        %1557 = vmatprep.subr.bf16.mxu0 0
        %1558 = vmatpush1.bf16.xpose.msra.mxu0 0
        %1559 = vmatprep.subr.bf16.mxu0 0
        %1560 = vmatpush1.bf16.xpose.msra.mxu0 0
        %1561 = vmatprep.subr.bf16.mxu0 0
        %1562 = vmatpush1.bf16.xpose.msra.mxu0 0
        %1563 = vmatprep.subr.bf16.mxu0 0
        %1564 = vmatpush1.bf16.xpose.msra.mxu0 0
        %1565 = vmatprep.subr.bf16.mxu0 0
        %1566 = vmatpush1.bf16.xpose.msra.mxu0 0
        %1567 = vmatprep.mubr.bf16.mxu0 0
        %1568 = vmatmul.mubr.bf16.gmra.mrb[0].mxu0 %v1530
        %v1569 = vpop.f32.mrb[0].mxu0
        %v1570 = vadd.f32 %v1480, %v1569
        %v1571 = vpop.f32.mrb[0].mxu0
        %v1572 = vpop.f32.mrb[0].mxu0
        %v1573 = vpop.f32.mrb[0].mxu0
        %1574 = vdwg.mxu0
        %v1576 = vsel %vm1482, %v1470, 0
        %v1579 = vsel %vm1482, %v1474, 0
        %1581 = vmatprep.subr.bf16.mxu0 0
        %1582 = vmatpush1.bf16.xpose.msra.mxu0 %v1579
        %1583 = vmatprep.subr.bf16.mxu0 0
        %1584 = vmatpush1.bf16.xpose.msra.mxu0 0
        %1585 = vmatprep.subr.bf16.mxu0 0
        %1586 = vmatpush1.bf16.xpose.msra.mxu0 0
        %1587 = vmatprep.subr.bf16.mxu0 0
        %1588 = vmatpush1.bf16.xpose.msra.mxu0 0
        %1589 = vmatprep.subr.bf16.mxu0 0
        %1590 = vmatpush1.bf16.xpose.msra.mxu0 0
        %1591 = vmatprep.subr.bf16.mxu0 0
        %1592 = vmatpush1.bf16.xpose.msra.mxu0 0
        %1593 = vmatprep.subr.bf16.mxu0 0
        %1594 = vmatpush1.bf16.xpose.msra.mxu0 0
        %1595 = vmatprep.subr.bf16.mxu0 0
        %1596 = vmatpush1.bf16.xpose.msra.mxu0 0
        %1597 = vmatprep.subr.bf16.mxu0 0
        %1598 = vmatpush1.bf16.xpose.msra.mxu0 0
        %1599 = vmatprep.subr.bf16.mxu0 0
        %1600 = vmatpush1.bf16.xpose.msra.mxu0 0
        %1601 = vmatprep.subr.bf16.mxu0 0
        %1602 = vmatpush1.bf16.xpose.msra.mxu0 0
        %1603 = vmatprep.subr.bf16.mxu0 0
        %1604 = vmatpush1.bf16.xpose.msra.mxu0 0
        %1605 = vmatprep.subr.bf16.mxu0 0
        %1606 = vmatpush1.bf16.xpose.msra.mxu0 0
        %1607 = vmatprep.subr.bf16.mxu0 0
        %1608 = vmatpush1.bf16.xpose.msra.mxu0 0
        %1609 = vmatprep.subr.bf16.mxu0 0
        %1610 = vmatpush1.bf16.xpose.msra.mxu0 0
        %1611 = vmatprep.subr.bf16.mxu0 0
        %1612 = vmatpush1.bf16.xpose.msra.mxu0 0
        %1613 = vmatprep.mubr.bf16.mxu0 0
        %1614 = vmatmul.mubr.bf16.gmra.mrb[0].mxu0 %v1576
        %v1615 = vpop.f32.mrb[0].mxu0
        %v1616 = vadd.f32 %v1480, %v1615
        %v1617 = vpop.f32.mrb[0].mxu0
        %v1618 = vpop.f32.mrb[0].mxu0
        %v1619 = vpop.f32.mrb[0].mxu0
        %1620 = vdwg.mxu0
        %v1622 = vsel %vm1482, %v1471, 0
        %v1625 = vsel %vm1482, %v1475, 0
        %1627 = vmatprep.subr.bf16.mxu0 0
        %1628 = vmatpush1.bf16.xpose.msra.mxu0 %v1625
        %1629 = vmatprep.subr.bf16.mxu0 0
        %1630 = vmatpush1.bf16.xpose.msra.mxu0 0
        %1631 = vmatprep.subr.bf16.mxu0 0
        %1632 = vmatpush1.bf16.xpose.msra.mxu0 0
        %1633 = vmatprep.subr.bf16.mxu0 0
        %1634 = vmatpush1.bf16.xpose.msra.mxu0 0
        %1635 = vmatprep.subr.bf16.mxu0 0
        %1636 = vmatpush1.bf16.xpose.msra.mxu0 0
        %1637 = vmatprep.subr.bf16.mxu0 0
        %1638 = vmatpush1.bf16.xpose.msra.mxu0 0
        %1639 = vmatprep.subr.bf16.mxu0 0
        %1640 = vmatpush1.bf16.xpose.msra.mxu0 0
        %1641 = vmatprep.subr.bf16.mxu0 0
        %1642 = vmatpush1.bf16.xpose.msra.mxu0 0
        %1643 = vmatprep.subr.bf16.mxu0 0
        %1644 = vmatpush1.bf16.xpose.msra.mxu0 0
        %1645 = vmatprep.subr.bf16.mxu0 0
        %1646 = vmatpush1.bf16.xpose.msra.mxu0 0
        %1647 = vmatprep.subr.bf16.mxu0 0
        %1648 = vmatpush1.bf16.xpose.msra.mxu0 0
        %1649 = vmatprep.subr.bf16.mxu0 0
        %1650 = vmatpush1.bf16.xpose.msra.mxu0 0
        %1651 = vmatprep.subr.bf16.mxu0 0
        %1652 = vmatpush1.bf16.xpose.msra.mxu0 0
        %1653 = vmatprep.subr.bf16.mxu0 0
        %1654 = vmatpush1.bf16.xpose.msra.mxu0 0
        %1655 = vmatprep.subr.bf16.mxu0 0
        %1656 = vmatpush1.bf16.xpose.msra.mxu0 0
        %1657 = vmatprep.subr.bf16.mxu0 0
        %1658 = vmatpush1.bf16.xpose.msra.mxu0 0
        %1659 = vmatprep.mubr.bf16.mxu0 0
        %1660 = vmatmul.mubr.bf16.gmra.mrb[0].mxu0 %v1622
        %v1661 = vpop.f32.mrb[0].mxu0
        %v1662 = vadd.f32 %v1480, %v1661
        %v1663 = vpop.f32.mrb[0].mxu0
        %v1664 = vpop.f32.mrb[0].mxu0
        %v1665 = vpop.f32.mrb[0].mxu0
        %1666 = vdwg.mxu0
        %v1667 = vsel %vm1482, %v1524, -inf
        %1668 = vmax.xlane.f32.xlu0 %v1667
        %v1669 = vpop.xlane.xlu0 %1668
        %v1670 = vsel %vm1482, %v1570, -inf
        %1671 = vmax.xlane.f32.xlu0 %v1670
        %v1672 = vpop.xlane.xlu0 %1671
        %v1673 = vsel %vm1482, %v1616, -inf
        %1674 = vmax.xlane.f32.xlu0 %v1673
        %v1675 = vpop.xlane.xlu0 %1674
        %v1676 = vsel %vm1482, %v1662, -inf
        %1677 = vmax.xlane.f32.xlu0 %v1676
        %v1678 = vpop.xlane.xlu0 %1677
        %v1679 = vsub.f32 %v1524, %v1669
        %v1680 = vsub.f32 %v1570, %v1672
        %v1681 = vsub.f32 %v1616, %v1675
        %v1682 = vsub.f32 %v1662, %v1678
        %v1683 = vmul.f32 %v1679, 1.442695
        %v1684 = vpow.pop %v1683
        %v1685 = vmul.f32 %v1680, 1.442695
        %v1686 = vpow.pop %v1685
        %v1687 = vmul.f32 %v1681, 1.442695
        %v1688 = vpow.pop %v1687
        %v1689 = vmul.f32 %v1682, 1.442695
        %v1690 = vpow.pop %v1689
        %v1691 = vsel %vm1482, %v1684, 0.0
        %1692 = vadd.xlane.f32.xlu0 %v1691
        %v1693 = vpop.xlane.xlu0 %1692
        %v1694 = vsel %vm1482, %v1686, 0.0
        %1695 = vadd.xlane.f32.xlu0 %v1694
        %v1696 = vpop.xlane.xlu0 %1695
        %v1697 = vsel %vm1482, %v1688, 0.0
        %1698 = vadd.xlane.f32.xlu0 %v1697
        %v1699 = vpop.xlane.xlu0 %1698
        %v1700 = vsel %vm1482, %v1690, 0.0
        %1701 = vadd.xlane.f32.xlu0 %v1700
        %v1702 = vpop.xlane.xlu0 %1701
        %v1703 = vrcp.pop %v1693
        %v1704 = vrcp.pop %v1696
        %v1705 = vrcp.pop %v1699
        %v1706 = vrcp.pop %v1702
        %v1707 = vmul.f32 %v1684, %v1703
        %v1708 = vmul.f32 %v1686, %v1704
        %v1709 = vmul.f32 %v1688, %v1705
        %v1710 = vmul.f32 %v1690, %v1706
        %v1711 = vpack.c.bf16 %v1707, %v1707
        %v1712 = vpack.c.bf16 %v1708, %v1708
        %v1713 = vpack.c.bf16 %v1709, %v1709
        %v1714 = vpack.c.bf16 %v1710, %v1710
        %v1715 = vpack.c.bf16 %v1307, %v1307
        %v1716 = vpack.c.bf16 %v1359, %v1359
        %v1717 = vpack.c.bf16 %v1411, %v1411
        %v1718 = vpack.c.bf16 %v1463, %v1463
        %v1720 = vsel %vm1482, %v1711, 0
        %vm1722 = vcmask 1043456
        %v1724 = vsel %vm1722, %v1715, 0
        %1726 = vmatprep.subr.bf16.mxu0 0
        %1727 = vmatpush1.bf16.msra.mxu0 %v1724
        %1728 = vmatprep.subr.bf16.mxu0 0
        %1729 = vmatpush1.bf16.msra.mxu0 0
        %1730 = vmatprep.subr.bf16.mxu0 0
        %1731 = vmatpush1.bf16.msra.mxu0 0
        %1732 = vmatprep.subr.bf16.mxu0 0
        %1733 = vmatpush1.bf16.msra.mxu0 0
        %1734 = vmatprep.subr.bf16.mxu0 0
        %1735 = vmatpush1.bf16.msra.mxu0 0
        %1736 = vmatprep.subr.bf16.mxu0 0
        %1737 = vmatpush1.bf16.msra.mxu0 0
        %1738 = vmatprep.subr.bf16.mxu0 0
        %1739 = vmatpush1.bf16.msra.mxu0 0
        %1740 = vmatprep.subr.bf16.mxu0 0
        %1741 = vmatpush1.bf16.msra.mxu0 0
        %1742 = vmatprep.subr.bf16.mxu0 0
        %1743 = vmatpush1.bf16.msra.mxu0 0
        %1744 = vmatprep.subr.bf16.mxu0 0
        %1745 = vmatpush1.bf16.msra.mxu0 0
        %1746 = vmatprep.subr.bf16.mxu0 0
        %1747 = vmatpush1.bf16.msra.mxu0 0
        %1748 = vmatprep.subr.bf16.mxu0 0
        %1749 = vmatpush1.bf16.msra.mxu0 0
        %1750 = vmatprep.subr.bf16.mxu0 0
        %1751 = vmatpush1.bf16.msra.mxu0 0
        %1752 = vmatprep.subr.bf16.mxu0 0
        %1753 = vmatpush1.bf16.msra.mxu0 0
        %1754 = vmatprep.subr.bf16.mxu0 0
        %1755 = vmatpush1.bf16.msra.mxu0 0
        %1756 = vmatprep.subr.bf16.mxu0 0
        %1757 = vmatpush1.bf16.msra.mxu0 0
        %1758 = vmatprep.mubr.bf16.mxu0 0
        %1759 = vmatmul.mubr.bf16.gmra.mrb[0].mxu0 %v1720
        %v1760 = vpop.f32.mrb[0].mxu0
        %v1761 = vadd.f32 0.0, %v1760
        %v1762 = vpop.f32.mrb[0].mxu0
        %v1763 = vpop.f32.mrb[0].mxu0
        %v1764 = vpop.f32.mrb[0].mxu0
        %1765 = vdwg.mxu0
        %v1767 = vsel %vm1482, %v1712, 0
        %v1770 = vsel %vm1722, %v1716, 0
        %1772 = vmatprep.subr.bf16.mxu0 0
        %1773 = vmatpush1.bf16.msra.mxu0 %v1770
        %1774 = vmatprep.subr.bf16.mxu0 0
        %1775 = vmatpush1.bf16.msra.mxu0 0
        %1776 = vmatprep.subr.bf16.mxu0 0
        %1777 = vmatpush1.bf16.msra.mxu0 0
        %1778 = vmatprep.subr.bf16.mxu0 0
        %1779 = vmatpush1.bf16.msra.mxu0 0
        %1780 = vmatprep.subr.bf16.mxu0 0
        %1781 = vmatpush1.bf16.msra.mxu0 0
        %1782 = vmatprep.subr.bf16.mxu0 0
        %1783 = vmatpush1.bf16.msra.mxu0 0
        %1784 = vmatprep.subr.bf16.mxu0 0
        %1785 = vmatpush1.bf16.msra.mxu0 0
        %1786 = vmatprep.subr.bf16.mxu0 0
        %1787 = vmatpush1.bf16.msra.mxu0 0
        %1788 = vmatprep.subr.bf16.mxu0 0
        %1789 = vmatpush1.bf16.msra.mxu0 0
        %1790 = vmatprep.subr.bf16.mxu0 0
        %1791 = vmatpush1.bf16.msra.mxu0 0
        %1792 = vmatprep.subr.bf16.mxu0 0
        %1793 = vmatpush1.bf16.msra.mxu0 0
        %1794 = vmatprep.subr.bf16.mxu0 0
        %1795 = vmatpush1.bf16.msra.mxu0 0
        %1796 = vmatprep.subr.bf16.mxu0 0
        %1797 = vmatpush1.bf16.msra.mxu0 0
        %1798 = vmatprep.subr.bf16.mxu0 0
        %1799 = vmatpush1.bf16.msra.mxu0 0
        %1800 = vmatprep.subr.bf16.mxu0 0
        %1801 = vmatpush1.bf16.msra.mxu0 0
        %1802 = vmatprep.subr.bf16.mxu0 0
        %1803 = vmatpush1.bf16.msra.mxu0 0
        %1804 = vmatprep.mubr.bf16.mxu0 0
        %1805 = vmatmul.mubr.bf16.gmra.mrb[0].mxu0 %v1767
        %v1806 = vpop.f32.mrb[0].mxu0
        %v1807 = vadd.f32 0.0, %v1806
        %v1808 = vpop.f32.mrb[0].mxu0
        %v1809 = vpop.f32.mrb[0].mxu0
        %v1810 = vpop.f32.mrb[0].mxu0
        %1811 = vdwg.mxu0
        %v1813 = vsel %vm1482, %v1713, 0
        %v1816 = vsel %vm1722, %v1717, 0
        %1818 = vmatprep.subr.bf16.mxu0 0
        %1819 = vmatpush1.bf16.msra.mxu0 %v1816
        %1820 = vmatprep.subr.bf16.mxu0 0
        %1821 = vmatpush1.bf16.msra.mxu0 0
        %1822 = vmatprep.subr.bf16.mxu0 0
        %1823 = vmatpush1.bf16.msra.mxu0 0
        %1824 = vmatprep.subr.bf16.mxu0 0
        %1825 = vmatpush1.bf16.msra.mxu0 0
        %1826 = vmatprep.subr.bf16.mxu0 0
        %1827 = vmatpush1.bf16.msra.mxu0 0
        %1828 = vmatprep.subr.bf16.mxu0 0
        %1829 = vmatpush1.bf16.msra.mxu0 0
        %1830 = vmatprep.subr.bf16.mxu0 0
        %1831 = vmatpush1.bf16.msra.mxu0 0
        %1832 = vmatprep.subr.bf16.mxu0 0
        %1833 = vmatpush1.bf16.msra.mxu0 0
        %1834 = vmatprep.subr.bf16.mxu0 0
        %1835 = vmatpush1.bf16.msra.mxu0 0
        %1836 = vmatprep.subr.bf16.mxu0 0
        %1837 = vmatpush1.bf16.msra.mxu0 0
        %1838 = vmatprep.subr.bf16.mxu0 0
        %1839 = vmatpush1.bf16.msra.mxu0 0
        %1840 = vmatprep.subr.bf16.mxu0 0
        %1841 = vmatpush1.bf16.msra.mxu0 0
        %1842 = vmatprep.subr.bf16.mxu0 0
        %1843 = vmatpush1.bf16.msra.mxu0 0
        %1844 = vmatprep.subr.bf16.mxu0 0
        %1845 = vmatpush1.bf16.msra.mxu0 0
        %1846 = vmatprep.subr.bf16.mxu0 0
        %1847 = vmatpush1.bf16.msra.mxu0 0
        %1848 = vmatprep.subr.bf16.mxu0 0
        %1849 = vmatpush1.bf16.msra.mxu0 0
        %1850 = vmatprep.mubr.bf16.mxu0 0
        %1851 = vmatmul.mubr.bf16.gmra.mrb[0].mxu0 %v1813
        %v1852 = vpop.f32.mrb[0].mxu0
        %v1853 = vadd.f32 0.0, %v1852
        %v1854 = vpop.f32.mrb[0].mxu0
        %v1855 = vpop.f32.mrb[0].mxu0
        %v1856 = vpop.f32.mrb[0].mxu0
        %1857 = vdwg.mxu0
        %v1859 = vsel %vm1482, %v1714, 0
        %v1862 = vsel %vm1722, %v1718, 0
        %1864 = vmatprep.subr.bf16.mxu0 0
        %1865 = vmatpush1.bf16.msra.mxu0 %v1862
        %1866 = vmatprep.subr.bf16.mxu0 0
        %1867 = vmatpush1.bf16.msra.mxu0 0
        %1868 = vmatprep.subr.bf16.mxu0 0
        %1869 = vmatpush1.bf16.msra.mxu0 0
        %1870 = vmatprep.subr.bf16.mxu0 0
        %1871 = vmatpush1.bf16.msra.mxu0 0
        %1872 = vmatprep.subr.bf16.mxu0 0
        %1873 = vmatpush1.bf16.msra.mxu0 0
        %1874 = vmatprep.subr.bf16.mxu0 0
        %1875 = vmatpush1.bf16.msra.mxu0 0
        %1876 = vmatprep.subr.bf16.mxu0 0
        %1877 = vmatpush1.bf16.msra.mxu0 0
        %1878 = vmatprep.subr.bf16.mxu0 0
        %1879 = vmatpush1.bf16.msra.mxu0 0
        %1880 = vmatprep.subr.bf16.mxu0 0
        %1881 = vmatpush1.bf16.msra.mxu0 0
        %1882 = vmatprep.subr.bf16.mxu0 0
        %1883 = vmatpush1.bf16.msra.mxu0 0
        %1884 = vmatprep.subr.bf16.mxu0 0
        %1885 = vmatpush1.bf16.msra.mxu0 0
        %1886 = vmatprep.subr.bf16.mxu0 0
        %1887 = vmatpush1.bf16.msra.mxu0 0
        %1888 = vmatprep.subr.bf16.mxu0 0
        %1889 = vmatpush1.bf16.msra.mxu0 0
        %1890 = vmatprep.subr.bf16.mxu0 0
        %1891 = vmatpush1.bf16.msra.mxu0 0
        %1892 = vmatprep.subr.bf16.mxu0 0
        %1893 = vmatpush1.bf16.msra.mxu0 0
        %1894 = vmatprep.subr.bf16.mxu0 0
        %1895 = vmatpush1.bf16.msra.mxu0 0
        %1896 = vmatprep.mubr.bf16.mxu0 0
        %1897 = vmatmul.mubr.bf16.gmra.mrb[0].mxu0 %v1859
        %v1898 = vpop.f32.mrb[0].mxu0
        %v1899 = vadd.f32 0.0, %v1898
        %v1900 = vpop.f32.mrb[0].mxu0
        %v1901 = vpop.f32.mrb[0].mxu0
        %v1902 = vpop.f32.mrb[0].mxu0
        %1903 = vdwg.mxu0
        %v1904 = vpack.c.bf16 %v1761, %v1761
        %v1905 = vpack.c.bf16 %v1807, %v1807
        %v1906 = vpack.c.bf16 %v1853, %v1853
        %v1907 = vpack.c.bf16 %v1899, %v1899
        %v1908 = vld [vmem:[%s9] sm:$0xf]
        %v1909 = vld [vmem:[%s9 + $0x4] sm:$0xf]
        %v1910 = vld [vmem:[%s9 + $0x8] sm:$0xf]
        %v1911 = vld [vmem:[%s9 + $0xc] sm:$0xf]
        %v1913 = vsel %vm1482, %v1904, 0
        %v1916 = vsel %vm1722, %v1908, 0
        %1918 = vmatprep.subr.bf16.mxu0 0
        %1919 = vmatpush1.bf16.msra.mxu0 %v1916
        %1920 = vmatprep.subr.bf16.mxu0 0
        %1921 = vmatpush1.bf16.msra.mxu0 0
        %1922 = vmatprep.subr.bf16.mxu0 0
        %1923 = vmatpush1.bf16.msra.mxu0 0
        %1924 = vmatprep.subr.bf16.mxu0 0
        %1925 = vmatpush1.bf16.msra.mxu0 0
        %1926 = vmatprep.subr.bf16.mxu0 0
        %1927 = vmatpush1.bf16.msra.mxu0 0
        %1928 = vmatprep.subr.bf16.mxu0 0
        %1929 = vmatpush1.bf16.msra.mxu0 0
        %1930 = vmatprep.subr.bf16.mxu0 0
        %1931 = vmatpush1.bf16.msra.mxu0 0
        %1932 = vmatprep.subr.bf16.mxu0 0
        %1933 = vmatpush1.bf16.msra.mxu0 0
        %1934 = vmatprep.subr.bf16.mxu0 0
        %1935 = vmatpush1.bf16.msra.mxu0 0
        %1936 = vmatprep.subr.bf16.mxu0 0
        %1937 = vmatpush1.bf16.msra.mxu0 0
        %1938 = vmatprep.subr.bf16.mxu0 0
        %1939 = vmatpush1.bf16.msra.mxu0 0
        %1940 = vmatprep.subr.bf16.mxu0 0
        %1941 = vmatpush1.bf16.msra.mxu0 0
        %1942 = vmatprep.subr.bf16.mxu0 0
        %1943 = vmatpush1.bf16.msra.mxu0 0
        %1944 = vmatprep.subr.bf16.mxu0 0
        %1945 = vmatpush1.bf16.msra.mxu0 0
        %1946 = vmatprep.subr.bf16.mxu0 0
        %1947 = vmatpush1.bf16.msra.mxu0 0
        %1948 = vmatprep.subr.bf16.mxu0 0
        %1949 = vmatpush1.bf16.msra.mxu0 0
        %1950 = vmatprep.mubr.bf16.mxu0 0
        %1951 = vmatmul.mubr.bf16.gmra.mrb[0].mxu0 %v1913
        %v1952 = vpop.f32.mrb[0].mxu0
        %v1953 = vadd.f32 0.0, %v1952
        %v1954 = vpop.f32.mrb[0].mxu0
        %v1955 = vpop.f32.mrb[0].mxu0
        %v1956 = vpop.f32.mrb[0].mxu0
        %1957 = vdwg.mxu0
        %v1959 = vsel %vm1482, %v1905, 0
        %v1962 = vsel %vm1722, %v1909, 0
        %1964 = vmatprep.subr.bf16.mxu0 0
        %1965 = vmatpush1.bf16.msra.mxu0 %v1962
        %1966 = vmatprep.subr.bf16.mxu0 0
        %1967 = vmatpush1.bf16.msra.mxu0 0
        %1968 = vmatprep.subr.bf16.mxu0 0
        %1969 = vmatpush1.bf16.msra.mxu0 0
        %1970 = vmatprep.subr.bf16.mxu0 0
        %1971 = vmatpush1.bf16.msra.mxu0 0
        %1972 = vmatprep.subr.bf16.mxu0 0
        %1973 = vmatpush1.bf16.msra.mxu0 0
        %1974 = vmatprep.subr.bf16.mxu0 0
        %1975 = vmatpush1.bf16.msra.mxu0 0
        %1976 = vmatprep.subr.bf16.mxu0 0
        %1977 = vmatpush1.bf16.msra.mxu0 0
        %1978 = vmatprep.subr.bf16.mxu0 0
        %1979 = vmatpush1.bf16.msra.mxu0 0
        %1980 = vmatprep.subr.bf16.mxu0 0
        %1981 = vmatpush1.bf16.msra.mxu0 0
        %1982 = vmatprep.subr.bf16.mxu0 0
        %1983 = vmatpush1.bf16.msra.mxu0 0
        %1984 = vmatprep.subr.bf16.mxu0 0
        %1985 = vmatpush1.bf16.msra.mxu0 0
        %1986 = vmatprep.subr.bf16.mxu0 0
        %1987 = vmatpush1.bf16.msra.mxu0 0
        %1988 = vmatprep.subr.bf16.mxu0 0
        %1989 = vmatpush1.bf16.msra.mxu0 0
        %1990 = vmatprep.subr.bf16.mxu0 0
        %1991 = vmatpush1.bf16.msra.mxu0 0
        %1992 = vmatprep.subr.bf16.mxu0 0
        %1993 = vmatpush1.bf16.msra.mxu0 0
        %1994 = vmatprep.subr.bf16.mxu0 0
        %1995 = vmatpush1.bf16.msra.mxu0 0
        %1996 = vmatprep.mubr.bf16.mxu0 0
        %1997 = vmatmul.mubr.bf16.gmra.mrb[0].mxu0 %v1959
        %v1998 = vpop.f32.mrb[0].mxu0
        %v1999 = vadd.f32 0.0, %v1998
        %v2000 = vpop.f32.mrb[0].mxu0
        %v2001 = vpop.f32.mrb[0].mxu0
        %v2002 = vpop.f32.mrb[0].mxu0
        %2003 = vdwg.mxu0
        %v2005 = vsel %vm1482, %v1906, 0
        %v2008 = vsel %vm1722, %v1910, 0
        %2010 = vmatprep.subr.bf16.mxu0 0
        %2011 = vmatpush1.bf16.msra.mxu0 %v2008
        %2012 = vmatprep.subr.bf16.mxu0 0
        %2013 = vmatpush1.bf16.msra.mxu0 0
        %2014 = vmatprep.subr.bf16.mxu0 0
        %2015 = vmatpush1.bf16.msra.mxu0 0
        %2016 = vmatprep.subr.bf16.mxu0 0
        %2017 = vmatpush1.bf16.msra.mxu0 0
        %2018 = vmatprep.subr.bf16.mxu0 0
        %2019 = vmatpush1.bf16.msra.mxu0 0
        %2020 = vmatprep.subr.bf16.mxu0 0
        %2021 = vmatpush1.bf16.msra.mxu0 0
        %2022 = vmatprep.subr.bf16.mxu0 0
        %2023 = vmatpush1.bf16.msra.mxu0 0
        %2024 = vmatprep.subr.bf16.mxu0 0
        %2025 = vmatpush1.bf16.msra.mxu0 0
        %2026 = vmatprep.subr.bf16.mxu0 0
        %2027 = vmatpush1.bf16.msra.mxu0 0
        %2028 = vmatprep.subr.bf16.mxu0 0
        %2029 = vmatpush1.bf16.msra.mxu0 0
        %2030 = vmatprep.subr.bf16.mxu0 0
        %2031 = vmatpush1.bf16.msra.mxu0 0
        %2032 = vmatprep.subr.bf16.mxu0 0
        %2033 = vmatpush1.bf16.msra.mxu0 0
        %2034 = vmatprep.subr.bf16.mxu0 0
        %2035 = vmatpush1.bf16.msra.mxu0 0
        %2036 = vmatprep.subr.bf16.mxu0 0
        %2037 = vmatpush1.bf16.msra.mxu0 0
        %2038 = vmatprep.subr.bf16.mxu0 0
        %2039 = vmatpush1.bf16.msra.mxu0 0
        %2040 = vmatprep.subr.bf16.mxu0 0
        %2041 = vmatpush1.bf16.msra.mxu0 0
        %2042 = vmatprep.mubr.bf16.mxu0 0
        %2043 = vmatmul.mubr.bf16.gmra.mrb[0].mxu0 %v2005
        %v2044 = vpop.f32.mrb[0].mxu0
        %v2045 = vadd.f32 0.0, %v2044
        %v2046 = vpop.f32.mrb[0].mxu0
        %v2047 = vpop.f32.mrb[0].mxu0
        %v2048 = vpop.f32.mrb[0].mxu0
        %2049 = vdwg.mxu0
        %v2051 = vsel %vm1482, %v1907, 0
        %v2054 = vsel %vm1722, %v1911, 0
        %2056 = vmatprep.subr.bf16.mxu0 0
        %2057 = vmatpush1.bf16.msra.mxu0 %v2054
        %2058 = vmatprep.subr.bf16.mxu0 0
        %2059 = vmatpush1.bf16.msra.mxu0 0
        %2060 = vmatprep.subr.bf16.mxu0 0
        %2061 = vmatpush1.bf16.msra.mxu0 0
        %2062 = vmatprep.subr.bf16.mxu0 0
        %2063 = vmatpush1.bf16.msra.mxu0 0
        %2064 = vmatprep.subr.bf16.mxu0 0
        %2065 = vmatpush1.bf16.msra.mxu0 0
        %2066 = vmatprep.subr.bf16.mxu0 0
        %2067 = vmatpush1.bf16.msra.mxu0 0
        %2068 = vmatprep.subr.bf16.mxu0 0
        %2069 = vmatpush1.bf16.msra.mxu0 0
        %2070 = vmatprep.subr.bf16.mxu0 0
        %2071 = vmatpush1.bf16.msra.mxu0 0
        %2072 = vmatprep.subr.bf16.mxu0 0
        %2073 = vmatpush1.bf16.msra.mxu0 0
        %2074 = vmatprep.subr.bf16.mxu0 0
        %2075 = vmatpush1.bf16.msra.mxu0 0
        %2076 = vmatprep.subr.bf16.mxu0 0
        %2077 = vmatpush1.bf16.msra.mxu0 0
        %2078 = vmatprep.subr.bf16.mxu0 0
        %2079 = vmatpush1.bf16.msra.mxu0 0
        %2080 = vmatprep.subr.bf16.mxu0 0
        %2081 = vmatpush1.bf16.msra.mxu0 0
        %2082 = vmatprep.subr.bf16.mxu0 0
        %2083 = vmatpush1.bf16.msra.mxu0 0
        %2084 = vmatprep.subr.bf16.mxu0 0
        %2085 = vmatpush1.bf16.msra.mxu0 0
        %2086 = vmatprep.subr.bf16.mxu0 0
        %2087 = vmatpush1.bf16.msra.mxu0 0
        %2088 = vmatprep.mubr.bf16.mxu0 0
        %2089 = vmatmul.mubr.bf16.gmra.mrb[0].mxu0 %v2051
        %v2090 = vpop.f32.mrb[0].mxu0
        %v2091 = vadd.f32 0.0, %v2090
        %v2092 = vpop.f32.mrb[0].mxu0
        %v2093 = vpop.f32.mrb[0].mxu0
        %v2094 = vpop.f32.mrb[0].mxu0
        %2095 = vdwg.mxu0
        %v2096 = vsel %vm660, %v1953, 0.0
        %v2097 = vsel %vm660, %v1999, 0.0
        %v2098 = vadd.f32 %v2096, %v2097
        %v2099 = vsel %vm660, %v2045, 0.0
        %v2100 = vadd.f32 %v2098, %v2099
        %v2101 = vsel %vm660, %v2091, 0.0
        %v2102 = vadd.f32 %v2100, %v2101
        %v2103 = vld [vmem:[%s10] sm:$0x1]
        %v2105 = vlaneseq
        %v2106 = vshrl.u32 %v2105, 7
        %v2107 = vsub.s32 0, %v2106
        %v2108 = vrot.slane %v2103, %v2107
        %v2110 = vadd.f32 %v2102, %v2108
        %v2111 = vadd.f32 %v656, %v2110
        %v2112 = vld [vmem:[%s17] sm:$0x1]
        %v2113 = vld [vmem:[%s18] sm:$0x1]
        %v2114 = vsel %vm660, %v2111, 0.0
        %2115 = vadd.xlane.f32.xlu0 %v2114
        %v2116 = vpop.xlane.xlu0 %2115
        %v2117 = vmul.f32 %v2116, %v664
        %v2118 = vsub.f32 %v2111, %v2117
        %v2119 = vmul.f32 %v2118, %v2118
        %v2120 = vsel %vm660, %v2119, 0.0
        %2121 = vadd.xlane.f32.xlu0 %v2120
        %v2122 = vpop.xlane.xlu0 %2121
        %v2123 = vmul.f32 %v2122, %v664
        %v2125 = vlaneseq
        %v2126 = vshrl.u32 %v2125, 7
        %v2127 = vsub.s32 0, %v2126
        %v2128 = vrot.slane %v2112, %v2127
        %v2130 = vmul.f32 %v2128, %v2118
        %v2131 = vadd.f32 %v2123, 1e-06
        %v2132 = vrsqrt.pop %v2131
        %v2133 = vmul.f32 %v2130, %v2132
        %v2135 = vlaneseq
        %v2136 = vshrl.u32 %v2135, 7
        %v2137 = vsub.s32 0, %v2136
        %v2138 = vrot.slane %v2113, %v2137
        %v2140 = vadd.f32 %v2133, %v2138
        %v2141 = vpack.c.bf16 %v2140, %v2140
        %v2142 = vld [vmem:[%s11] sm:$0xf]
        %v2143 = vld [vmem:[%s11 + $0x4] sm:$0xf]
        %v2144 = vld [vmem:[%s11 + $0x8] sm:$0xf]
        %v2145 = vld [vmem:[%s11 + $0xc] sm:$0xf]
        %v2146 = vld [vmem:[%s12] sm:$0x1]
        %v2148 = vlaneseq
        %v2149 = vshrl.u32 %v2148, 7
        %v2150 = vsub.s32 0, %v2149
        %v2151 = vrot.slane %v2146, %v2150
        %v2157 = vunpack.c.l.b16 %v2142
        %v2158 = vunpack.c.l.b16 %v2143
        %v2159 = vunpack.c.l.b16 %v2144
        %v2160 = vunpack.c.l.b16 %v2145
        %v2161 = vpack.c.b16 %v2158, %v2157
        %v2162 = vpack.c.b16 %v2160, %v2159
        %v2166 = vsel %vm660, %v2141, 0
        %2168 = vmatprep.subr.bf16.mxu0 0
        %2169 = vmatpush1.bf16.msra.mxu0 %v2161
        %2170 = vmatprep.subr.bf16.mxu0 0
        %2171 = vmatpush1.bf16.msra.mxu0 %v2162
        %2172 = vmatprep.subr.bf16.mxu0 0
        %2173 = vmatpush1.bf16.msra.mxu0 0
        %2174 = vmatprep.subr.bf16.mxu0 0
        %2175 = vmatpush1.bf16.msra.mxu0 0
        %2176 = vmatprep.subr.bf16.mxu0 0
        %2177 = vmatpush1.bf16.msra.mxu0 0
        %2178 = vmatprep.subr.bf16.mxu0 0
        %2179 = vmatpush1.bf16.msra.mxu0 0
        %2180 = vmatprep.subr.bf16.mxu0 0
        %2181 = vmatpush1.bf16.msra.mxu0 0
        %2182 = vmatprep.subr.bf16.mxu0 0
        %2183 = vmatpush1.bf16.msra.mxu0 0
        %2184 = vmatprep.subr.bf16.mxu0 0
        %2185 = vmatpush1.bf16.msra.mxu0 0
        %2186 = vmatprep.subr.bf16.mxu0 0
        %2187 = vmatpush1.bf16.msra.mxu0 0
        %2188 = vmatprep.subr.bf16.mxu0 0
        %2189 = vmatpush1.bf16.msra.mxu0 0
        %2190 = vmatprep.subr.bf16.mxu0 0
        %2191 = vmatpush1.bf16.msra.mxu0 0
        %2192 = vmatprep.subr.bf16.mxu0 0
        %2193 = vmatpush1.bf16.msra.mxu0 0
        %2194 = vmatprep.subr.bf16.mxu0 0
        %2195 = vmatpush1.bf16.msra.mxu0 0
        %2196 = vmatprep.subr.bf16.mxu0 0
        %2197 = vmatpush1.bf16.msra.mxu0 0
        %2198 = vmatprep.subr.bf16.mxu0 0
        %2199 = vmatpush1.bf16.msra.mxu0 0
        %2200 = vmatprep.mubr.bf16.mxu0 0
        %2201 = vmatmul.mubr.bf16.gmra.mrb[0].mxu0 %v2166
        %v2202 = vpop.f32.mrb[0].mxu0
        %v2203 = vadd.f32 %v2151, %v2202
        %v2204 = vpop.f32.mrb[0].mxu0
        %v2205 = vpop.f32.mrb[0].mxu0
        %v2206 = vpop.f32.mrb[0].mxu0
        %2207 = vdwg.mxu0
        %v2208 = vmul.f32 %v2203, %v2203
        %v2209 = vmul.f32 %v2203, %v2208
        %v2210 = vmul.f32 %v2209, 0.044715
        %v2211 = vadd.f32 %v2203, %v2210
        %v2212 = vmul.f32 %v2211, 0.7978846
        %v2213 = vtanh.pop %v2212
        %v2214 = vadd.f32 %v2213, 1.0
        %v2215 = vmul.f32 %v2214, 0.5
        %v2216 = vmul.f32 %v2203, %v2215
        %v2217 = vpack.c.bf16 %v2216, %v2216
        %v2218 = vld [vmem:[%s13] sm:$0xf]
        %v2219 = vld [vmem:[%s13 + $0x4] sm:$0xf]
        %v2220 = vld [vmem:[%s13 + $0x8] sm:$0xf]
        %v2221 = vld [vmem:[%s13 + $0xc] sm:$0xf]
        %v2222 = vld [vmem:[%s13 + $0x10] sm:$0xf]
        %v2223 = vld [vmem:[%s13 + $0x14] sm:$0xf]
        %v2224 = vld [vmem:[%s13 + $0x18] sm:$0xf]
        %v2225 = vld [vmem:[%s13 + $0x1c] sm:$0xf]
        %v2226 = vld [vmem:[%s13 + $0x20] sm:$0xf]
        %v2227 = vld [vmem:[%s13 + $0x24] sm:$0xf]
        %v2228 = vld [vmem:[%s13 + $0x28] sm:$0xf]
        %v2229 = vld [vmem:[%s13 + $0x2c] sm:$0xf]
        %v2230 = vld [vmem:[%s13 + $0x30] sm:$0xf]
        %v2231 = vld [vmem:[%s13 + $0x34] sm:$0xf]
        %v2232 = vld [vmem:[%s13 + $0x38] sm:$0xf]
        %v2233 = vld [vmem:[%s13 + $0x3c] sm:$0xf]
        %v2234 = vld [vmem:[%s14] sm:$0x1]
        %v2236 = vlaneseq
        %v2237 = vshrl.u32 %v2236, 7
        %v2238 = vsub.s32 0, %v2237
        %v2239 = vrot.slane %v2234, %v2238
        %v2257 = vunpack.c.l.b16 %v2218
        %v2258 = vunpack.c.l.b16 %v2219
        %v2259 = vunpack.c.l.b16 %v2220
        %v2260 = vunpack.c.l.b16 %v2221
        %v2261 = vunpack.c.l.b16 %v2222
        %v2262 = vunpack.c.l.b16 %v2223
        %v2263 = vunpack.c.l.b16 %v2224
        %v2264 = vunpack.c.l.b16 %v2225
        %v2265 = vunpack.c.l.b16 %v2226
        %v2266 = vunpack.c.l.b16 %v2227
        %v2267 = vunpack.c.l.b16 %v2228
        %v2268 = vunpack.c.l.b16 %v2229
        %v2269 = vunpack.c.l.b16 %v2230
        %v2270 = vunpack.c.l.b16 %v2231
        %v2271 = vunpack.c.l.b16 %v2232
        %v2272 = vunpack.c.l.b16 %v2233
        %v2273 = vpack.c.b16 %v2258, %v2257
        %v2274 = vpack.c.b16 %v2260, %v2259
        %v2275 = vpack.c.b16 %v2262, %v2261
        %v2276 = vpack.c.b16 %v2264, %v2263
        %v2277 = vpack.c.b16 %v2266, %v2265
        %v2278 = vpack.c.b16 %v2268, %v2267
        %v2279 = vpack.c.b16 %v2270, %v2269
        %v2280 = vpack.c.b16 %v2272, %v2271
        %2289 = vmatprep.subr.bf16.mxu0 0
        %2290 = vmatpush1.bf16.msra.mxu0 %v2273
        %2291 = vmatprep.subr.bf16.mxu0 0
        %2292 = vmatpush1.bf16.msra.mxu0 %v2274
        %2293 = vmatprep.subr.bf16.mxu0 0
        %2294 = vmatpush1.bf16.msra.mxu0 %v2275
        %2295 = vmatprep.subr.bf16.mxu0 0
        %2296 = vmatpush1.bf16.msra.mxu0 %v2276
        %2297 = vmatprep.subr.bf16.mxu0 0
        %2298 = vmatpush1.bf16.msra.mxu0 %v2277
        %2299 = vmatprep.subr.bf16.mxu0 0
        %2300 = vmatpush1.bf16.msra.mxu0 %v2278
        %2301 = vmatprep.subr.bf16.mxu0 0
        %2302 = vmatpush1.bf16.msra.mxu0 %v2279
        %2303 = vmatprep.subr.bf16.mxu0 0
        %2304 = vmatpush1.bf16.msra.mxu0 %v2280
        %2305 = vmatprep.subr.bf16.mxu0 0
        %2306 = vmatpush1.bf16.msra.mxu0 0
        %2307 = vmatprep.subr.bf16.mxu0 0
        %2308 = vmatpush1.bf16.msra.mxu0 0
        %2309 = vmatprep.subr.bf16.mxu0 0
        %2310 = vmatpush1.bf16.msra.mxu0 0
        %2311 = vmatprep.subr.bf16.mxu0 0
        %2312 = vmatpush1.bf16.msra.mxu0 0
        %2313 = vmatprep.subr.bf16.mxu0 0
        %2314 = vmatpush1.bf16.msra.mxu0 0
        %2315 = vmatprep.subr.bf16.mxu0 0
        %2316 = vmatpush1.bf16.msra.mxu0 0
        %2317 = vmatprep.subr.bf16.mxu0 0
        %2318 = vmatpush1.bf16.msra.mxu0 0
        %2319 = vmatprep.subr.bf16.mxu0 0
        %2320 = vmatpush1.bf16.msra.mxu0 0
        %2321 = vmatprep.mubr.bf16.mxu0 0
        %2322 = vmatmul.mubr.bf16.gmra.mrb[0].mxu0 %v2217
        %v2323 = vpop.f32.mrb[0].mxu0
        %v2324 = vadd.f32 %v2239, %v2323
        %v2325 = vpop.f32.mrb[0].mxu0
        %v2326 = vpop.f32.mrb[0].mxu0
        %v2327 = vpop.f32.mrb[0].mxu0
        %2328 = vdwg.mxu0
        %v2329 = vadd.f32 %v2111, %v2324
        %2330 = vst.msk [vmem:[%s639] sm:$0xff] %vm660, %v2329
        %s2331 = sand.u32 %s471, 1
        %s2332 = scalar_lea.sflag [#allocation3], %s2331
        %s2333 = sand.u32 %s471, 1
        %s2334 = smul.addr %s2333, 8
        %s2335 = scalar_lea.vmem [#allocation2], %s2334
        // Predicated region
        $region97: #{tpu_custom_call.1} parent=95 // pred_check
          %p2336 = pneg %p481
        $region98: #{tpu_custom_call.1} parent=95 // pred_check_branch
          %2338 = sbr.rel (%p2336) target = $region100
        $region99: #{tpu_custom_call.1} parent=95 // pred_region
          %s2340 = ssub.s32 128, 128
          %2341 = vsyncadd %s2332, %s2340
          %s2342 = sadd.s32 %s38, %s37
          %s2343 = smul.addr %s2342, 128
          %s2344 = scalar_lea.hbm %s19, %s2343
          %s2346 = sshll.u32 %s2335, 4
          %s2347 = int_to_ptr.vmem [resolvable:$true] %s2346
          %2349 = dma.vmem_to_hbm [thread:$0]  %s2347, 128, %s2344, %s2332
        $region100: #{tpu_custom_call.1} parent=95 // pred_fallthru
          _
      $region96: #{tpu_custom_call.1} parent=5 // pred_fallthru
        _
      %p2350 = scmp.le.s32.totalorder 2, %s28
      // Predicated region
      $region101: #{tpu_custom_call.1} parent=5 // pred_check
        %p2351 = pneg %p2350
      $region102: #{tpu_custom_call.1} parent=5 // pred_check_branch
        %2353 = sbr.rel (%p2351) target = $region104
      $region103: #{tpu_custom_call.1} parent=5 // pred_region
        %s2354 = ssub.s32 %s28, 2
        // Predicated region
        $region105: #{tpu_custom_call.1} parent=103 // pred_check
          %p2355 = pneg %p487
        $region106: #{tpu_custom_call.1} parent=103 // pred_check_branch
          %2357 = sbr.rel (%p2355) target = $region108
        $region107: #{tpu_custom_call.1} parent=103 // pred_region
          %s2358 = sand.u32 %s472, 1
          %s2359 = scalar_lea.sflag [#allocation3], %s2358
          %s2360 = sand.u32 %s472, 1
          %s2361 = smul.addr %s2360, 8
          %s2362 = scalar_lea.vmem [#allocation2], %s2361
          %2363 = dma.done %s2359, 128
        $region108: #{tpu_custom_call.1} parent=103 // pred_fallthru
          _
      $region104: #{tpu_custom_call.1} parent=5 // pred_fallthru
        _
    $region6: #{tpu_custom_call.1} parent=1 // loop_footer
      %s32 = sadd.s32 1, %s28
    $region7: #{tpu_custom_call.1} parent=1 // loop_footer_branch
      %27 = sbr.rel target = $region3
    $region8: #{tpu_custom_call.1} parent=1 // loop_exit
      _
    %2364 = vsyncpa [#allocation3], 1
    %s2365 = scalar_lea.sflag [#allocation3], 1
    %2366 = vsyncpa %s2365, 1

</llo_original>
